<compile_context>
chip_gen: v6e
topology: v6e:2x2x1
jax: 0.10.0
libtpu: 0.0.40
codegen_flags: <defaults>
</compile_context>

<pallas_src>
import math
import numpy as np
import jax
import jax.numpy as jnp
from jax import lax
from jax.experimental import pallas as pl
from jax.experimental.pallas import tpu as pltpu

_EPS = 1e-5                                   # PyTorch LayerNorm default eps
OUT_DIM = 6 * 30 * 2 + 6                      # 366 = reference predict-head width
OUT_PAD = ((OUT_DIM + 127) // 128) * 128      # 384: lane-dense padded width


def _layer_norm(y, gamma, beta):
    mean = jnp.mean(y, axis=-1, keepdims=True)
    var = jnp.mean((y - mean) ** 2, axis=-1, keepdims=True)
    return (y - mean) * lax.rsqrt(var + _EPS) * gamma + beta


# ----------------------------- fused Pallas kernel ---------------------------

def vectornet_kernel(h_ref, lens_ref,
                     w0_ref, b0_ref, g0_ref, t0_ref,
                     w1t_ref, w1b_ref, b1_ref, g1_ref, t1_ref,
                     w2t_ref, w2b_ref, b2_ref, g2_ref, t2_ref,
                     wq_ref, bq_ref, wk_ref, bk_ref, wv_ref, bv_ref,
                     wp_ref, bp_ref, gp_ref, tp_ref,
                     out_ref):
    M, L, H = h_ref.shape
    B, O = out_ref.shape
    P = M // B
    Hh = w0_ref.shape[1]
    bf16 = jnp.bfloat16

    # validity mask built in-kernel from int32 lengths (no [M, L, 1] f32 input)
    iota_l = lax.broadcasted_iota(jnp.int32, (M, L, 1), 1)
    valid = iota_l < lens_ref[...]                                   # [M, L, 1] bool

    def ln_relu(y, g, t):
        return jnp.maximum(_layer_norm(y, g, t), 0.0)

    def pool(enc):
        # enc is post-ReLU (>= 0): 0-fill masked max == masked max when any
        # position is valid, and == 0 for fully-padded polylines (matches the
        # reference merge_tensors zero padding of element_states_batch).
        return jnp.max(jnp.where(valid, enc, 0.0), axis=1)           # [M, Hh] f32

    # ---- sub-graph layer 0 (full weight on the raw vector slab) ----
    x2d = h_ref[...].reshape(M * L, H)                               # bf16
    y0 = jnp.dot(x2d, w0_ref[...], preferred_element_type=jnp.float32) + b0_ref[...]
    enc0 = ln_relu(y0, g0_ref[...], t0_ref[...]).reshape(M, L, Hh)
    pool0 = pool(enc0)

    # ---- sub-graph layers 1/2 with split weights:
    #      cat([enc, pooled]) @ W  ==  enc @ W_top + pooled @ W_bot ----
    def split_layer(enc_prev, pool_prev, wt_ref, wb_ref, b_ref, g_ref, t_ref):
        top = jnp.dot(enc_prev.reshape(M * L, Hh).astype(bf16), wt_ref[...],
                      preferred_element_type=jnp.float32).reshape(M, L, Hh)
        bot = jnp.dot(pool_prev.astype(bf16), wb_ref[...],
                      preferred_element_type=jnp.float32) + b_ref[...]      # [M, Hh]
        enc = ln_relu(top + bot[:, None, :], g_ref[...], t_ref[...])
        return enc, pool(enc)

    enc1, pool1 = split_layer(enc0, pool0, w1t_ref, w1b_ref, b1_ref, g1_ref, t1_ref)
    _, pool2 = split_layer(enc1, pool1, w2t_ref, w2b_ref, b2_ref, g2_ref, t2_ref)

    # final masked max of cat([enc2, pool2.expand]) over L == cat([pool2, pool2])
    element = jnp.concatenate([pool2, pool2], axis=-1)               # [M, H] f32

    # ---- global self-attention, row-0 query only (all B batches at once) ----
    # Reference attention mask is row-filled ([:length][:length] bug) so row 0
    # attends to every column: no mask tensor needed (bug reproduced).
    elb = element.astype(bf16)
    x0b = elb.reshape(B, P, H)[:, 0, :]                              # [B, H] bf16
    q0 = jnp.dot(x0b, wq_ref[...], preferred_element_type=jnp.float32) + bq_ref[...]
    k3 = (jnp.dot(elb, wk_ref[...], preferred_element_type=jnp.float32)
          + bk_ref[...]).reshape(B, P, H)
    v3 = (jnp.dot(elb, wv_ref[...], preferred_element_type=jnp.float32)
          + bv_ref[...]).reshape(B, P, H)

    scale = 1.0 / math.sqrt(H)
    scores = jnp.sum(q0[:, None, :] * k3, axis=-1, keepdims=True) * scale   # [B, P, 1]
    scores = scores - jnp.max(scores, axis=1, keepdims=True)
    p = jnp.exp(scores)
    # approx reciprocal on the EUP slot; error is ~bf16-ulp level (documented).
    p = p * pl.reciprocal(jnp.sum(p, axis=1, keepdims=True), approx=True)
    ctx = jnp.sum(p * v3, axis=1)                                    # [B, H] f32

    # ---- predict MLP: Linear + LayerNorm (over true OUT_DIM cols) + ReLU ----
    y = jnp.dot(ctx.astype(bf16), wp_ref[...],
                preferred_element_type=jnp.float32) + bp_ref[...]    # [B, O]
    col = lax.broadcasted_iota(jnp.int32, (1, O), 1) < OUT_DIM       # [1, O]
    colf = col.astype(jnp.float32)
    n = float(OUT_DIM)
    mean = jnp.sum(y * colf, axis=-1, keepdims=True) / n
    d = (y - mean) * colf
    var = jnp.sum(d * d, axis=-1, keepdims=True) / n
    norm = (y - mean) * lax.rsqrt(var + _EPS) * gp_ref[...] + tp_ref[...]
    out_ref[...] = jnp.where(col, jnp.maximum(norm, 0.0), 0.0)


# ------------------------------ wrappers --------------------------------------

def vectornet_fused_forward(prep, h, lens, batch_size):
    """Single pallas_call over the whole network.  h [M, L, H] bf16,
    lens [M, 1, 1] int32 -> [B, OUT_PAD] f32 (lane-dense, slice to 366 later)."""
    args = [h, lens,
            prep['w0'], prep['b0'], prep['g0'], prep['t0'],
            prep['w1t'], prep['w1b'], prep['b1'], prep['g1'], prep['t1'],
            prep['w2t'], prep['w2b'], prep['b2'], prep['g2'], prep['t2'],
            prep['wq'], prep['bq'], prep['wk'], prep['bk'], prep['wv'], prep['bv'],
            prep['wp'], prep['bp'], prep['gp'], prep['tp']]

    def full_spec(a):
        nd = a.ndim
        return pl.BlockSpec(a.shape, lambda i, _nd=nd: (0,) * _nd)

    return pl.pallas_call(
        vectornet_kernel,
        out_shape=jax.ShapeDtypeStruct((batch_size, OUT_PAD), jnp.float32),
        grid=(1,),
        in_specs=[full_spec(a) for a in args],
        out_specs=pl.BlockSpec((batch_size, OUT_PAD), lambda i: (0, 0)),
        compiler_params=pltpu.CompilerParams(dimension_semantics=("arbitrary",)),
    )(*args)


@jax.jit
def vectornet_loss(prep, h, lens, gt):
    """Entire device section (fused kernel + log_softmax + loss) in one jit."""
    B = gt.shape[0]
    out = vectornet_fused_forward(prep, h, lens, B)                  # [B, OUT_PAD]
    pred_probs = jax.nn.log_softmax(out[:, OUT_DIM - 6:OUT_DIM], axis=-1)   # [B, 6]
    traj = out[:, :OUT_DIM - 6].reshape(B, 6, 30, 2)

    endpoints = traj[:, :, -1, :]                                    # [B, 6, 2]
    # TODO(synk): reference computes the endpoint cdist/argmin in float64;
    # f32 here (same argmin except for exact ties).
    dist2 = jnp.sum((endpoints - gt[:, -1, :][:, None, :]) ** 2, axis=-1)   # [B, 6]
    argmin = jnp.argmin(dist2, axis=-1)                                     # [B]
    pred = jnp.take_along_axis(traj, argmin[:, None, None, None], axis=1)[:, 0]
    diff = pred - gt
    ad = jnp.abs(diff)
    loss1 = jnp.mean(jnp.where(ad < 1.0, 0.5 * diff * diff, ad - 0.5),
                     axis=(1, 2))                                           # [B]
    loss2 = -jnp.take_along_axis(pred_probs, argmin[:, None], axis=1)[:, 0] # [B]
    return jnp.mean(loss1 + 1.0 * loss2)


# ------------------------------ parameters ------------------------------------

def init_params(key, hidden_size, out_dim, depth=3):
    ks = jax.random.split(key, 8)

    def lin(k, i, o):
        kw, kb = jax.random.split(k)
        w = jax.random.normal(kw, (i, o), jnp.float32) * (1.0 / math.sqrt(i))
        b = jax.random.normal(kb, (1, o), jnp.float32) * 0.01
        return w, b

    params = {}
    sub = []
    for d in range(depth):
        w, b = lin(ks[d], hidden_size, hidden_size // 2)
        sub.append((w, b,
                    jnp.ones((1, hidden_size // 2), jnp.float32),
                    jnp.zeros((1, hidden_size // 2), jnp.float32)))
    params['sub_graph'] = sub
    params['q'] = lin(ks[3], hidden_size, hidden_size)
    params['k'] = lin(ks[4], hidden_size, hidden_size)
    params['v'] = lin(ks[5], hidden_size, hidden_size)
    w, b = lin(ks[6], hidden_size, out_dim)
    params['predict'] = (w, b,
                         jnp.ones((1, out_dim), jnp.float32),
                         jnp.zeros((1, out_dim), jnp.float32))
    return params


def prepare_params(params):
    """One-time host-side parameter prep (hoisted out of the forward):
    split the concat-weights of sub-graph layers 1/2, cast MXU operands to
    bf16, and pad the predict head to a lane-dense OUT_PAD width."""
    bf = lambda a: a.astype(jnp.bfloat16)
    prep = {}
    w0, b0, g0, t0 = params['sub_graph'][0]
    prep.update(w0=bf(w0), b0=b0, g0=g0, t0=t0)
    for d in (1, 2):
        w, b, g, t = params['sub_graph'][d]
        Hh = w.shape[1]
        prep[f'w{d}t'] = bf(w[:Hh, :])   # rows hitting the `enc` half of the concat
        prep[f'w{d}b'] = bf(w[Hh:, :])   # rows hitting the `pooled` half
        prep[f'b{d}'] = b
        prep[f'g{d}'] = g
        prep[f't{d}'] = t
    for name in ('q', 'k', 'v'):
        w, b = params[name]
        prep[f'w{name}'] = bf(w)
        prep[f'b{name}'] = b
    wp, bp, gp, tp = params['predict']
    pad = OUT_PAD - wp.shape[1]
    prep['wp'] = bf(jnp.pad(wp, ((0, 0), (0, pad))))
    prep['bp'] = jnp.pad(bp, ((0, 0), (0, pad)))
    prep['gp'] = jnp.pad(gp, ((0, 0), (0, pad)))
    prep['tp'] = jnp.pad(tp, ((0, 0), (0, pad)))
    return prep


# ------------------------------ host packing ----------------------------------

def pack_mapping(mapping, hidden_size):
    """One-time host-side packing of the ragged polyline data (== merge_tensors):
    bf16 vector slab [M, L, H] plus int32 per-polyline lengths [M, 1, 1].
    TODO(synk): batch_init(mapping) / to_origin_coordinate are dataset
    coordinate-frame utilities with no compute content; omitted here."""
    matrix = [m['matrix'] for m in mapping]
    spans = [m['polyline_spans'] for m in mapping]
    labels = [m['labels'] for m in mapping]
    B = len(matrix)
    per_batch = [[np.asarray(matrix[i][sp], np.float32) for sp in spans[i]]
                 for i in range(B)]
    P = max(len(polys) for polys in per_batch)
    max_len = max(arr.shape[0] for polys in per_batch for arr in polys)
    L = ((max_len + 7) // 8) * 8                 # sublane-align the vector axis
    M = B * P

    h = np.zeros((M, L, hidden_size), np.float32)
    lens = np.zeros((M, 1, 1), np.int32)
    for i, polys in enumerate(per_batch):
        for j, arr in enumerate(polys):
            n = arr.shape[0]
            h[i * P + j, :n] = arr
            lens[i * P + j] = n
    gt = np.stack([np.asarray(l, np.float32).reshape(30, 2) for l in labels])
    return (jnp.asarray(h, dtype=jnp.bfloat16),
            jnp.asarray(lens),
            jnp.asarray(gt))


# ------------------------------ main -------------------------------------------

if __name__ == "__main__":
    key = jax.random.PRNGKey(0)
    HIDDEN = 32
    BATCH = 2
    poly_lengths = [[3, 8, 5, 6], [4, 7, 8, 2]]   # vectors per polyline

    k_par, k_dat, k_lab = jax.random.split(key, 3)
    params = init_params(k_par, HIDDEN, OUT_DIM)

    data_keys = jax.random.split(k_dat, BATCH)
    lab_keys = jax.random.split(k_lab, BATCH)
    mapping = []
    for i in range(BATCH):
        total = sum(poly_lengths[i])
        mat = np.asarray(jax.random.normal(data_keys[i], (total, HIDDEN), jnp.float32))
        spans, start = [], 0
        for ln in poly_lengths[i]:
            spans.append(slice(start, start + ln))
            start += ln
        lab = np.asarray(jax.random.normal(lab_keys[i], (60,), jnp.float32))
        mapping.append({'matrix': mat, 'polyline_spans': spans, 'labels': lab})

    # Hoisted (one-time) host work: parameter prep and ragged-data packing.
    prep = prepare_params(params)
    h, lens, gt = pack_mapping(mapping, HIDDEN)

    loss = vectornet_loss(prep, h, lens, gt)
    jax.block_until_ready(loss)
    print("KERNEL_OK")
</pallas_src>

<mosaic_0001>
module attributes {stable_mosaic.version = 11 : i64} {
  func.func @vectornet_kernel(%arg0: i32, %arg1: memref<8x8x32xbf16, #tpu.memory_space<vmem>>, %arg2: memref<8x1x1xi32, #tpu.memory_space<vmem>>, %arg3: memref<32x16xbf16, #tpu.memory_space<vmem>>, %arg4: memref<1x16xf32, #tpu.memory_space<vmem>>, %arg5: memref<1x16xf32, #tpu.memory_space<vmem>>, %arg6: memref<1x16xf32, #tpu.memory_space<vmem>>, %arg7: memref<16x16xbf16, #tpu.memory_space<vmem>>, %arg8: memref<16x16xbf16, #tpu.memory_space<vmem>>, %arg9: memref<1x16xf32, #tpu.memory_space<vmem>>, %arg10: memref<1x16xf32, #tpu.memory_space<vmem>>, %arg11: memref<1x16xf32, #tpu.memory_space<vmem>>, %arg12: memref<16x16xbf16, #tpu.memory_space<vmem>>, %arg13: memref<16x16xbf16, #tpu.memory_space<vmem>>, %arg14: memref<1x16xf32, #tpu.memory_space<vmem>>, %arg15: memref<1x16xf32, #tpu.memory_space<vmem>>, %arg16: memref<1x16xf32, #tpu.memory_space<vmem>>, %arg17: memref<32x32xbf16, #tpu.memory_space<vmem>>, %arg18: memref<1x32xf32, #tpu.memory_space<vmem>>, %arg19: memref<32x32xbf16, #tpu.memory_space<vmem>>, %arg20: memref<1x32xf32, #tpu.memory_space<vmem>>, %arg21: memref<32x32xbf16, #tpu.memory_space<vmem>>, %arg22: memref<1x32xf32, #tpu.memory_space<vmem>>, %arg23: memref<32x384xbf16, #tpu.memory_space<vmem>>, %arg24: memref<1x384xf32, #tpu.memory_space<vmem>>, %arg25: memref<1x384xf32, #tpu.memory_space<vmem>>, %arg26: memref<1x384xf32, #tpu.memory_space<vmem>>, %arg27: memref<2x384xf32, #tpu.memory_space<vmem>>) attributes {dimension_semantics = [#tpu.dimension_semantics<arbitrary>], iteration_bounds = array<i64: 1>, scalar_prefetch = 0 : i64, scratch_operands = 0 : i64, tpu.core_type = #tpu.core_type<tc>, window_params = [{pipeline_mode = #tpu.pipeline_mode<synchronous>, transform_indices = @transform_0, window_bounds = array<i64: 8, 8, 32>}, {pipeline_mode = #tpu.pipeline_mode<synchronous>, transform_indices = @transform_1, window_bounds = array<i64: 8, 1, 1>}, {pipeline_mode = #tpu.pipeline_mode<synchronous>, transform_indices = @transform_2, window_bounds = array<i64: 32, 16>}, {pipeline_mode = #tpu.pipeline_mode<synchronous>, transform_indices = @transform_3, window_bounds = array<i64: 1, 16>}, {pipeline_mode = #tpu.pipeline_mode<synchronous>, transform_indices = @transform_4, window_bounds = array<i64: 1, 16>}, {pipeline_mode = #tpu.pipeline_mode<synchronous>, transform_indices = @transform_5, window_bounds = array<i64: 1, 16>}, {pipeline_mode = #tpu.pipeline_mode<synchronous>, transform_indices = @transform_6, window_bounds = array<i64: 16, 16>}, {pipeline_mode = #tpu.pipeline_mode<synchronous>, transform_indices = @transform_7, window_bounds = array<i64: 16, 16>}, {pipeline_mode = #tpu.pipeline_mode<synchronous>, transform_indices = @transform_8, window_bounds = array<i64: 1, 16>}, {pipeline_mode = #tpu.pipeline_mode<synchronous>, transform_indices = @transform_9, window_bounds = array<i64: 1, 16>}, {pipeline_mode = #tpu.pipeline_mode<synchronous>, transform_indices = @transform_10, window_bounds = array<i64: 1, 16>}, {pipeline_mode = #tpu.pipeline_mode<synchronous>, transform_indices = @transform_11, window_bounds = array<i64: 16, 16>}, {pipeline_mode = #tpu.pipeline_mode<synchronous>, transform_indices = @transform_12, window_bounds = array<i64: 16, 16>}, {pipeline_mode = #tpu.pipeline_mode<synchronous>, transform_indices = @transform_13, window_bounds = array<i64: 1, 16>}, {pipeline_mode = #tpu.pipeline_mode<synchronous>, transform_indices = @transform_14, window_bounds = array<i64: 1, 16>}, {pipeline_mode = #tpu.pipeline_mode<synchronous>, transform_indices = @transform_15, window_bounds = array<i64: 1, 16>}, {pipeline_mode = #tpu.pipeline_mode<synchronous>, transform_indices = @transform_16, window_bounds = array<i64: 32, 32>}, {pipeline_mode = #tpu.pipeline_mode<synchronous>, transform_indices = @transform_17, window_bounds = array<i64: 1, 32>}, {pipeline_mode = #tpu.pipeline_mode<synchronous>, transform_indices = @transform_18, window_bounds = array<i64: 32, 32>}, {pipeline_mode = #tpu.pipeline_mode<synchronous>, transform_indices = @transform_19, window_bounds = array<i64: 1, 32>}, {pipeline_mode = #tpu.pipeline_mode<synchronous>, transform_indices = @transform_20, window_bounds = array<i64: 32, 32>}, {pipeline_mode = #tpu.pipeline_mode<synchronous>, transform_indices = @transform_21, window_bounds = array<i64: 1, 32>}, {pipeline_mode = #tpu.pipeline_mode<synchronous>, transform_indices = @transform_22, window_bounds = array<i64: 32, 384>}, {pipeline_mode = #tpu.pipeline_mode<synchronous>, transform_indices = @transform_23, window_bounds = array<i64: 1, 384>}, {pipeline_mode = #tpu.pipeline_mode<synchronous>, transform_indices = @transform_24, window_bounds = array<i64: 1, 384>}, {pipeline_mode = #tpu.pipeline_mode<synchronous>, transform_indices = @transform_25, window_bounds = array<i64: 1, 384>}, {pipeline_mode = #tpu.pipeline_mode<synchronous>, transform_indices = @transform_26, window_bounds = array<i64: 2, 384>}]} {
    %0 = tpu.iota {dimensions = array<i32: 1>} : vector<8x8x1xi32>
    %c0 = arith.constant 0 : index
    %c0_0 = arith.constant 0 : index
    %c0_1 = arith.constant 0 : index
    %1 = vector.load %arg2[%c0, %c0_0, %c0_1] : memref<8x1x1xi32, #tpu.memory_space<vmem>>, vector<8x1x1xi32>
    %2 = vector.broadcast %1 : vector<8x1x1xi32> to vector<8x8x1xi32>
    %3 = arith.cmpi slt, %0, %2 : vector<8x8x1xi32>
    %c0_2 = arith.constant 0 : index
    %c0_3 = arith.constant 0 : index
    %c0_4 = arith.constant 0 : index
    %4 = vector.load %arg1[%c0_2, %c0_3, %c0_4] : memref<8x8x32xbf16, #tpu.memory_space<vmem>>, vector<8x8x32xbf16>
    %5 = vector.shape_cast %4 : vector<8x8x32xbf16> to vector<64x32xbf16>
    %c0_5 = arith.constant 0 : index
    %c0_6 = arith.constant 0 : index
    %6 = vector.load %arg3[%c0_5, %c0_6] : memref<32x16xbf16, #tpu.memory_space<vmem>>, vector<32x16xbf16>
    %cst = arith.constant dense<0.000000e+00> : vector<64x16xf32>
    %7 = tpu.matmul %5, %6, %cst {dimension_numbers = #tpu.dot_dimension_numbers<[1], [0], [0], [1], [0, 0, 1, 1], [], []>} : vector<64x32xbf16>, vector<32x16xbf16>, vector<64x16xf32> -> vector<64x16xf32>
    %c0_7 = arith.constant 0 : index
    %c0_8 = arith.constant 0 : index
    %8 = vector.load %arg4[%c0_7, %c0_8] : memref<1x16xf32, #tpu.memory_space<vmem>>, vector<1x16xf32>
    %9 = vector.broadcast %8 : vector<1x16xf32> to vector<64x16xf32>
    %10 = arith.addf %7, %9 : vector<64x16xf32>
    %c0_9 = arith.constant 0 : index
    %c0_10 = arith.constant 0 : index
    %11 = vector.load %arg5[%c0_9, %c0_10] : memref<1x16xf32, #tpu.memory_space<vmem>>, vector<1x16xf32>
    %c0_11 = arith.constant 0 : index
    %c0_12 = arith.constant 0 : index
    %12 = vector.load %arg6[%c0_11, %c0_12] : memref<1x16xf32, #tpu.memory_space<vmem>>, vector<1x16xf32>
    %cst_13 = arith.constant dense<0.000000e+00> : vector<64xf32>
    %13 = vector.multi_reduction <add>, %10, %cst_13 [1] : vector<64x16xf32> to vector<64xf32>
    %14 = vector.shape_cast %13 : vector<64xf32> to vector<64x1xf32>
    %cst_14 = arith.constant 1.600000e+01 : f32
    %15 = vector.broadcast %cst_14 : f32 to vector<64x1xf32>
    %16 = arith.divf %14, %15 : vector<64x1xf32>
    %17 = vector.broadcast %16 : vector<64x1xf32> to vector<64x16xf32>
    %18 = arith.subf %10, %17 : vector<64x16xf32>
    %19 = arith.mulf %18, %18 : vector<64x16xf32>
    %cst_15 = arith.constant dense<0.000000e+00> : vector<64xf32>
    %20 = vector.multi_reduction <add>, %19, %cst_15 [1] : vector<64x16xf32> to vector<64xf32>
    %21 = vector.shape_cast %20 : vector<64xf32> to vector<64x1xf32>
    %cst_16 = arith.constant 1.600000e+01 : f32
    %22 = vector.broadcast %cst_16 : f32 to vector<64x1xf32>
    %23 = arith.divf %21, %22 : vector<64x1xf32>
    %24 = vector.broadcast %16 : vector<64x1xf32> to vector<64x16xf32>
    %25 = arith.subf %10, %24 : vector<64x16xf32>
    %cst_17 = arith.constant 9.99999974E-6 : f32
    %26 = vector.broadcast %cst_17 : f32 to vector<64x1xf32>
    %27 = arith.addf %23, %26 : vector<64x1xf32>
    %28 = math.rsqrt %27 : vector<64x1xf32>
    %29 = vector.broadcast %28 : vector<64x1xf32> to vector<64x16xf32>
    %30 = arith.mulf %25, %29 : vector<64x16xf32>
    %31 = vector.broadcast %11 : vector<1x16xf32> to vector<64x16xf32>
    %32 = arith.mulf %30, %31 : vector<64x16xf32>
    %33 = vector.broadcast %12 : vector<1x16xf32> to vector<64x16xf32>
    %34 = arith.addf %32, %33 : vector<64x16xf32>
    %cst_18 = arith.constant 0.000000e+00 : f32
    %35 = vector.broadcast %cst_18 : f32 to vector<64x16xf32>
    %36 = arith.maximumf %34, %35 : vector<64x16xf32>
    %37 = vector.shape_cast %36 : vector<64x16xf32> to vector<8x8x16xf32>
    %cst_19 = arith.constant 0.000000e+00 : f32
    %38 = vector.shape_cast %3 : vector<8x8x1xi1> to vector<8x8x1xi1>
    %39 = vector.broadcast %38 : vector<8x8x1xi1> to vector<8x8x16xi1>
    %40 = vector.broadcast %cst_19 : f32 to vector<8x8x16xf32>
    %41 = arith.select %39, %37, %40 : vector<8x8x16xi1>, vector<8x8x16xf32>
    %cst_20 = arith.constant dense<0xFF800000> : vector<8x16xf32>
    %42 = vector.multi_reduction <maximumf>, %41, %cst_20 [1] : vector<8x8x16xf32> to vector<8x16xf32>
    %43 = vector.shape_cast %37 : vector<8x8x16xf32> to vector<64x16xf32>
    %44 = arith.truncf %43 : vector<64x16xf32> to vector<64x16xbf16>
    %c0_21 = arith.constant 0 : index
    %c0_22 = arith.constant 0 : index
    %45 = vector.load %arg7[%c0_21, %c0_22] : memref<16x16xbf16, #tpu.memory_space<vmem>>, vector<16x16xbf16>
    %cst_23 = arith.constant dense<0.000000e+00> : vector<64x16xf32>
    %46 = tpu.matmul %44, %45, %cst_23 {dimension_numbers = #tpu.dot_dimension_numbers<[1], [0], [0], [1], [0, 0, 1, 1], [], []>} : vector<64x16xbf16>, vector<16x16xbf16>, vector<64x16xf32> -> vector<64x16xf32>
    %47 = vector.shape_cast %46 : vector<64x16xf32> to vector<8x8x16xf32>
    %48 = arith.truncf %42 : vector<8x16xf32> to vector<8x16xbf16>
    %c0_24 = arith.constant 0 : index
    %c0_25 = arith.constant 0 : index
    %49 = vector.load %arg8[%c0_24, %c0_25] : memref<16x16xbf16, #tpu.memory_space<vmem>>, vector<16x16xbf16>
    %cst_26 = arith.constant dense<0.000000e+00> : vector<8x16xf32>
    %50 = tpu.matmul %48, %49, %cst_26 {dimension_numbers = #tpu.dot_dimension_numbers<[1], [0], [0], [1], [0, 0, 1, 1], [], []>} : vector<8x16xbf16>, vector<16x16xbf16>, vector<8x16xf32> -> vector<8x16xf32>
    %c0_27 = arith.constant 0 : index
    %c0_28 = arith.constant 0 : index
    %51 = vector.load %arg9[%c0_27, %c0_28] : memref<1x16xf32, #tpu.memory_space<vmem>>, vector<1x16xf32>
    %52 = vector.broadcast %51 : vector<1x16xf32> to vector<8x16xf32>
    %53 = arith.addf %50, %52 : vector<8x16xf32>
    %54 = vector.shape_cast %53 : vector<8x16xf32> to vector<8x1x16xf32>
    %55 = vector.broadcast %54 : vector<8x1x16xf32> to vector<8x8x16xf32>
    %56 = arith.addf %47, %55 : vector<8x8x16xf32>
    %c0_29 = arith.constant 0 : index
    %c0_30 = arith.constant 0 : index
    %57 = vector.load %arg10[%c0_29, %c0_30] : memref<1x16xf32, #tpu.memory_space<vmem>>, vector<1x16xf32>
    %c0_31 = arith.constant 0 : index
    %c0_32 = arith.constant 0 : index
    %58 = vector.load %arg11[%c0_31, %c0_32] : memref<1x16xf32, #tpu.memory_space<vmem>>, vector<1x16xf32>
    %cst_33 = arith.constant dense<0.000000e+00> : vector<8x8xf32>
    %59 = vector.multi_reduction <add>, %56, %cst_33 [2] : vector<8x8x16xf32> to vector<8x8xf32>
    %60 = vector.shape_cast %59 : vector<8x8xf32> to vector<8x8x1xf32>
    %cst_34 = arith.constant 1.600000e+01 : f32
    %61 = vector.broadcast %cst_34 : f32 to vector<8x8x1xf32>
    %62 = arith.divf %60, %61 : vector<8x8x1xf32>
    %63 = vector.broadcast %62 : vector<8x8x1xf32> to vector<8x8x16xf32>
    %64 = arith.subf %56, %63 : vector<8x8x16xf32>
    %65 = arith.mulf %64, %64 : vector<8x8x16xf32>
    %cst_35 = arith.constant dense<0.000000e+00> : vector<8x8xf32>
    %66 = vector.multi_reduction <add>, %65, %cst_35 [2] : vector<8x8x16xf32> to vector<8x8xf32>
    %67 = vector.shape_cast %66 : vector<8x8xf32> to vector<8x8x1xf32>
    %cst_36 = arith.constant 1.600000e+01 : f32
    %68 = vector.broadcast %cst_36 : f32 to vector<8x8x1xf32>
    %69 = arith.divf %67, %68 : vector<8x8x1xf32>
    %70 = vector.broadcast %62 : vector<8x8x1xf32> to vector<8x8x16xf32>
    %71 = arith.subf %56, %70 : vector<8x8x16xf32>
    %cst_37 = arith.constant 9.99999974E-6 : f32
    %72 = vector.broadcast %cst_37 : f32 to vector<8x8x1xf32>
    %73 = arith.addf %69, %72 : vector<8x8x1xf32>
    %74 = math.rsqrt %73 : vector<8x8x1xf32>
    %75 = vector.broadcast %74 : vector<8x8x1xf32> to vector<8x8x16xf32>
    %76 = arith.mulf %71, %75 : vector<8x8x16xf32>
    %77 = vector.shape_cast %57 : vector<1x16xf32> to vector<1x1x16xf32>
    %78 = vector.broadcast %77 : vector<1x1x16xf32> to vector<8x8x16xf32>
    %79 = arith.mulf %76, %78 : vector<8x8x16xf32>
    %80 = vector.shape_cast %58 : vector<1x16xf32> to vector<1x1x16xf32>
    %81 = vector.broadcast %80 : vector<1x1x16xf32> to vector<8x8x16xf32>
    %82 = arith.addf %79, %81 : vector<8x8x16xf32>
    %cst_38 = arith.constant 0.000000e+00 : f32
    %83 = vector.broadcast %cst_38 : f32 to vector<8x8x16xf32>
    %84 = arith.maximumf %82, %83 : vector<8x8x16xf32>
    %cst_39 = arith.constant 0.000000e+00 : f32
    %85 = vector.shape_cast %3 : vector<8x8x1xi1> to vector<8x8x1xi1>
    %86 = vector.broadcast %85 : vector<8x8x1xi1> to vector<8x8x16xi1>
    %87 = vector.broadcast %cst_39 : f32 to vector<8x8x16xf32>
    %88 = arith.select %86, %84, %87 : vector<8x8x16xi1>, vector<8x8x16xf32>
    %cst_40 = arith.constant dense<0xFF800000> : vector<8x16xf32>
    %89 = vector.multi_reduction <maximumf>, %88, %cst_40 [1] : vector<8x8x16xf32> to vector<8x16xf32>
    %90 = vector.shape_cast %84 : vector<8x8x16xf32> to vector<64x16xf32>
    %91 = arith.truncf %90 : vector<64x16xf32> to vector<64x16xbf16>
    %c0_41 = arith.constant 0 : index
    %c0_42 = arith.constant 0 : index
    %92 = vector.load %arg12[%c0_41, %c0_42] : memref<16x16xbf16, #tpu.memory_space<vmem>>, vector<16x16xbf16>
    %cst_43 = arith.constant dense<0.000000e+00> : vector<64x16xf32>
    %93 = tpu.matmul %91, %92, %cst_43 {dimension_numbers = #tpu.dot_dimension_numbers<[1], [0], [0], [1], [0, 0, 1, 1], [], []>} : vector<64x16xbf16>, vector<16x16xbf16>, vector<64x16xf32> -> vector<64x16xf32>
    %94 = vector.shape_cast %93 : vector<64x16xf32> to vector<8x8x16xf32>
    %95 = arith.truncf %89 : vector<8x16xf32> to vector<8x16xbf16>
    %c0_44 = arith.constant 0 : index
    %c0_45 = arith.constant 0 : index
    %96 = vector.load %arg13[%c0_44, %c0_45] : memref<16x16xbf16, #tpu.memory_space<vmem>>, vector<16x16xbf16>
    %cst_46 = arith.constant dense<0.000000e+00> : vector<8x16xf32>
    %97 = tpu.matmul %95, %96, %cst_46 {dimension_numbers = #tpu.dot_dimension_numbers<[1], [0], [0], [1], [0, 0, 1, 1], [], []>} : vector<8x16xbf16>, vector<16x16xbf16>, vector<8x16xf32> -> vector<8x16xf32>
    %c0_47 = arith.constant 0 : index
    %c0_48 = arith.constant 0 : index
    %98 = vector.load %arg14[%c0_47, %c0_48] : memref<1x16xf32, #tpu.memory_space<vmem>>, vector<1x16xf32>
    %99 = vector.broadcast %98 : vector<1x16xf32> to vector<8x16xf32>
    %100 = arith.addf %97, %99 : vector<8x16xf32>
    %101 = vector.shape_cast %100 : vector<8x16xf32> to vector<8x1x16xf32>
    %102 = vector.broadcast %101 : vector<8x1x16xf32> to vector<8x8x16xf32>
    %103 = arith.addf %94, %102 : vector<8x8x16xf32>
    %c0_49 = arith.constant 0 : index
    %c0_50 = arith.constant 0 : index
    %104 = vector.load %arg15[%c0_49, %c0_50] : memref<1x16xf32, #tpu.memory_space<vmem>>, vector<1x16xf32>
    %c0_51 = arith.constant 0 : index
    %c0_52 = arith.constant 0 : index
    %105 = vector.load %arg16[%c0_51, %c0_52] : memref<1x16xf32, #tpu.memory_space<vmem>>, vector<1x16xf32>
    %cst_53 = arith.constant dense<0.000000e+00> : vector<8x8xf32>
    %106 = vector.multi_reduction <add>, %103, %cst_53 [2] : vector<8x8x16xf32> to vector<8x8xf32>
    %107 = vector.shape_cast %106 : vector<8x8xf32> to vector<8x8x1xf32>
    %cst_54 = arith.constant 1.600000e+01 : f32
    %108 = vector.broadcast %cst_54 : f32 to vector<8x8x1xf32>
    %109 = arith.divf %107, %108 : vector<8x8x1xf32>
    %110 = vector.broadcast %109 : vector<8x8x1xf32> to vector<8x8x16xf32>
    %111 = arith.subf %103, %110 : vector<8x8x16xf32>
    %112 = arith.mulf %111, %111 : vector<8x8x16xf32>
    %cst_55 = arith.constant dense<0.000000e+00> : vector<8x8xf32>
    %113 = vector.multi_reduction <add>, %112, %cst_55 [2] : vector<8x8x16xf32> to vector<8x8xf32>
    %114 = vector.shape_cast %113 : vector<8x8xf32> to vector<8x8x1xf32>
    %cst_56 = arith.constant 1.600000e+01 : f32
    %115 = vector.broadcast %cst_56 : f32 to vector<8x8x1xf32>
    %116 = arith.divf %114, %115 : vector<8x8x1xf32>
    %117 = vector.broadcast %109 : vector<8x8x1xf32> to vector<8x8x16xf32>
    %118 = arith.subf %103, %117 : vector<8x8x16xf32>
    %cst_57 = arith.constant 9.99999974E-6 : f32
    %119 = vector.broadcast %cst_57 : f32 to vector<8x8x1xf32>
    %120 = arith.addf %116, %119 : vector<8x8x1xf32>
    %121 = math.rsqrt %120 : vector<8x8x1xf32>
    %122 = vector.broadcast %121 : vector<8x8x1xf32> to vector<8x8x16xf32>
    %123 = arith.mulf %118, %122 : vector<8x8x16xf32>
    %124 = vector.shape_cast %104 : vector<1x16xf32> to vector<1x1x16xf32>
    %125 = vector.broadcast %124 : vector<1x1x16xf32> to vector<8x8x16xf32>
    %126 = arith.mulf %123, %125 : vector<8x8x16xf32>
    %127 = vector.shape_cast %105 : vector<1x16xf32> to vector<1x1x16xf32>
    %128 = vector.broadcast %127 : vector<1x1x16xf32> to vector<8x8x16xf32>
    %129 = arith.addf %126, %128 : vector<8x8x16xf32>
    %cst_58 = arith.constant 0.000000e+00 : f32
    %130 = vector.broadcast %cst_58 : f32 to vector<8x8x16xf32>
    %131 = arith.maximumf %129, %130 : vector<8x8x16xf32>
    %cst_59 = arith.constant 0.000000e+00 : f32
    %132 = vector.shape_cast %3 : vector<8x8x1xi1> to vector<8x8x1xi1>
    %133 = vector.broadcast %132 : vector<8x8x1xi1> to vector<8x8x16xi1>
    %134 = vector.broadcast %cst_59 : f32 to vector<8x8x16xf32>
    %135 = arith.select %133, %131, %134 : vector<8x8x16xi1>, vector<8x8x16xf32>
    %cst_60 = arith.constant dense<0xFF800000> : vector<8x16xf32>
    %136 = vector.multi_reduction <maximumf>, %135, %cst_60 [1] : vector<8x8x16xf32> to vector<8x16xf32>
    %137 = tpu.concatenate %136, %136 in 1 : vector<8x16xf32>, vector<8x16xf32> -> vector<8x32xf32>
    %138 = arith.truncf %137 : vector<8x32xf32> to vector<8x32xbf16>
    %139 = vector.shape_cast %138 : vector<8x32xbf16> to vector<2x4x32xbf16>
    %140 = vector.extract_strided_slice %139 {offsets = [0, 0, 0], sizes = [2, 1, 32], strides = [1, 1, 1]} : vector<2x4x32xbf16> to vector<2x1x32xbf16>
    %141 = vector.shape_cast %140 : vector<2x1x32xbf16> to vector<2x32xbf16>
    %c0_61 = arith.constant 0 : index
    %c0_62 = arith.constant 0 : index
    %142 = vector.load %arg17[%c0_61, %c0_62] : memref<32x32xbf16, #tpu.memory_space<vmem>>, vector<32x32xbf16>
    %cst_63 = arith.constant dense<0.000000e+00> : vector<2x32xf32>
    %143 = tpu.matmul %141, %142, %cst_63 {dimension_numbers = #tpu.dot_dimension_numbers<[1], [0], [0], [1], [0, 0, 1, 1], [], []>} : vector<2x32xbf16>, vector<32x32xbf16>, vector<2x32xf32> -> vector<2x32xf32>
    %c0_64 = arith.constant 0 : index
    %c0_65 = arith.constant 0 : index
    %144 = vector.load %arg18[%c0_64, %c0_65] : memref<1x32xf32, #tpu.memory_space<vmem>>, vector<1x32xf32>
    %145 = vector.broadcast %144 : vector<1x32xf32> to vector<2x32xf32>
    %146 = arith.addf %143, %145 : vector<2x32xf32>
    %c0_66 = arith.constant 0 : index
    %c0_67 = arith.constant 0 : index
    %147 = vector.load %arg19[%c0_66, %c0_67] : memref<32x32xbf16, #tpu.memory_space<vmem>>, vector<32x32xbf16>
    %cst_68 = arith.constant dense<0.000000e+00> : vector<8x32xf32>
    %148 = tpu.matmul %138, %147, %cst_68 {dimension_numbers = #tpu.dot_dimension_numbers<[1], [0], [0], [1], [0, 0, 1, 1], [], []>} : vector<8x32xbf16>, vector<32x32xbf16>, vector<8x32xf32> -> vector<8x32xf32>
    %c0_69 = arith.constant 0 : index
    %c0_70 = arith.constant 0 : index
    %149 = vector.load %arg20[%c0_69, %c0_70] : memref<1x32xf32, #tpu.memory_space<vmem>>, vector<1x32xf32>
    %150 = vector.broadcast %149 : vector<1x32xf32> to vector<8x32xf32>
    %151 = arith.addf %148, %150 : vector<8x32xf32>
    %152 = vector.shape_cast %151 : vector<8x32xf32> to vector<2x4x32xf32>
    %c0_71 = arith.constant 0 : index
    %c0_72 = arith.constant 0 : index
    %153 = vector.load %arg21[%c0_71, %c0_72] : memref<32x32xbf16, #tpu.memory_space<vmem>>, vector<32x32xbf16>
    %cst_73 = arith.constant dense<0.000000e+00> : vector<8x32xf32>
    %154 = tpu.matmul %138, %153, %cst_73 {dimension_numbers = #tpu.dot_dimension_numbers<[1], [0], [0], [1], [0, 0, 1, 1], [], []>} : vector<8x32xbf16>, vector<32x32xbf16>, vector<8x32xf32> -> vector<8x32xf32>
    %c0_74 = arith.constant 0 : index
    %c0_75 = arith.constant 0 : index
    %155 = vector.load %arg22[%c0_74, %c0_75] : memref<1x32xf32, #tpu.memory_space<vmem>>, vector<1x32xf32>
    %156 = vector.broadcast %155 : vector<1x32xf32> to vector<8x32xf32>
    %157 = arith.addf %154, %156 : vector<8x32xf32>
    %158 = vector.shape_cast %157 : vector<8x32xf32> to vector<2x4x32xf32>
    %159 = vector.shape_cast %146 : vector<2x32xf32> to vector<2x1x32xf32>
    %160 = vector.broadcast %159 : vector<2x1x32xf32> to vector<2x4x32xf32>
    %161 = arith.mulf %160, %152 : vector<2x4x32xf32>
    %cst_76 = arith.constant dense<0.000000e+00> : vector<2x4xf32>
    %162 = vector.multi_reduction <add>, %161, %cst_76 [2] : vector<2x4x32xf32> to vector<2x4xf32>
    %163 = vector.shape_cast %162 : vector<2x4xf32> to vector<2x4x1xf32>
    %cst_77 = arith.constant 0.176776692 : f32
    %164 = vector.broadcast %cst_77 : f32 to vector<2x4x1xf32>
    %165 = arith.mulf %163, %164 : vector<2x4x1xf32>
    %cst_78 = arith.constant dense<0xFF800000> : vector<2x1xf32>
    %166 = vector.multi_reduction <maximumf>, %165, %cst_78 [1] : vector<2x4x1xf32> to vector<2x1xf32>
    %167 = vector.shape_cast %166 : vector<2x1xf32> to vector<2x1x1xf32>
    %168 = vector.broadcast %167 : vector<2x1x1xf32> to vector<2x4x1xf32>
    %169 = arith.subf %165, %168 : vector<2x4x1xf32>
    %170 = math.exp %169 : vector<2x4x1xf32>
    %cst_79 = arith.constant dense<0.000000e+00> : vector<2x1xf32>
    %171 = vector.multi_reduction <add>, %170, %cst_79 [1] : vector<2x4x1xf32> to vector<2x1xf32>
    %172 = vector.shape_cast %171 : vector<2x1xf32> to vector<2x1x1xf32>
    %173 = tpu.reciprocal %172 {approx = true} : vector<2x1x1xf32> -> vector<2x1x1xf32>
    %174 = vector.broadcast %173 : vector<2x1x1xf32> to vector<2x4x1xf32>
    %175 = arith.mulf %170, %174 : vector<2x4x1xf32>
    %176 = vector.broadcast %175 : vector<2x4x1xf32> to vector<2x4x32xf32>
    %177 = arith.mulf %176, %158 : vector<2x4x32xf32>
    %cst_80 = arith.constant dense<0.000000e+00> : vector<2x32xf32>
    %178 = vector.multi_reduction <add>, %177, %cst_80 [1] : vector<2x4x32xf32> to vector<2x32xf32>
    %179 = arith.truncf %178 : vector<2x32xf32> to vector<2x32xbf16>
    %c0_81 = arith.constant 0 : index
    %c0_82 = arith.constant 0 : index
    %180 = vector.load %arg23[%c0_81, %c0_82] : memref<32x384xbf16, #tpu.memory_space<vmem>>, vector<32x384xbf16>
    %cst_83 = arith.constant dense<0.000000e+00> : vector<2x384xf32>
    %181 = tpu.matmul %179, %180, %cst_83 {dimension_numbers = #tpu.dot_dimension_numbers<[1], [0], [0], [1], [0, 0, 1, 1], [], []>} : vector<2x32xbf16>, vector<32x384xbf16>, vector<2x384xf32> -> vector<2x384xf32>
    %c0_84 = arith.constant 0 : index
    %c0_85 = arith.constant 0 : index
    %182 = vector.load %arg24[%c0_84, %c0_85] : memref<1x384xf32, #tpu.memory_space<vmem>>, vector<1x384xf32>
    %183 = vector.broadcast %182 : vector<1x384xf32> to vector<2x384xf32>
    %184 = arith.addf %181, %183 : vector<2x384xf32>
    %185 = tpu.iota {dimensions = array<i32: 1>} : vector<1x384xi32>
    %c366_i32 = arith.constant 366 : i32
    %186 = vector.broadcast %c366_i32 : i32 to vector<1x384xi32>
    %187 = arith.cmpi slt, %185, %186 : vector<1x384xi32>
    %188 = arith.extui %187 : vector<1x384xi1> to vector<1x384xi32>
    %189 = arith.sitofp %188 : vector<1x384xi32> to vector<1x384xf32>
    %190 = vector.broadcast %189 : vector<1x384xf32> to vector<2x384xf32>
    %191 = arith.mulf %184, %190 : vector<2x384xf32>
    %cst_86 = arith.constant dense<0.000000e+00> : vector<2xf32>
    %192 = vector.multi_reduction <add>, %191, %cst_86 [1] : vector<2x384xf32> to vector<2xf32>
    %193 = vector.shape_cast %192 : vector<2xf32> to vector<2x1xf32>
    %cst_87 = arith.constant 3.660000e+02 : f32
    %194 = vector.broadcast %cst_87 : f32 to vector<2x1xf32>
    %195 = arith.divf %193, %194 : vector<2x1xf32>
    %196 = vector.broadcast %195 : vector<2x1xf32> to vector<2x384xf32>
    %197 = arith.subf %184, %196 : vector<2x384xf32>
    %198 = vector.broadcast %189 : vector<1x384xf32> to vector<2x384xf32>
    %199 = arith.mulf %197, %198 : vector<2x384xf32>
    %200 = arith.mulf %199, %199 : vector<2x384xf32>
    %cst_88 = arith.constant dense<0.000000e+00> : vector<2xf32>
    %201 = vector.multi_reduction <add>, %200, %cst_88 [1] : vector<2x384xf32> to vector<2xf32>
    %202 = vector.shape_cast %201 : vector<2xf32> to vector<2x1xf32>
    %cst_89 = arith.constant 3.660000e+02 : f32
    %203 = vector.broadcast %cst_89 : f32 to vector<2x1xf32>
    %204 = arith.divf %202, %203 : vector<2x1xf32>
    %205 = vector.broadcast %195 : vector<2x1xf32> to vector<2x384xf32>
    %206 = arith.subf %184, %205 : vector<2x384xf32>
    %cst_90 = arith.constant 9.99999974E-6 : f32
    %207 = vector.broadcast %cst_90 : f32 to vector<2x1xf32>
    %208 = arith.addf %204, %207 : vector<2x1xf32>
    %209 = math.rsqrt %208 : vector<2x1xf32>
    %210 = vector.broadcast %209 : vector<2x1xf32> to vector<2x384xf32>
    %211 = arith.mulf %206, %210 : vector<2x384xf32>
    %c0_91 = arith.constant 0 : index
    %c0_92 = arith.constant 0 : index
    %212 = vector.load %arg25[%c0_91, %c0_92] : memref<1x384xf32, #tpu.memory_space<vmem>>, vector<1x384xf32>
    %213 = vector.broadcast %212 : vector<1x384xf32> to vector<2x384xf32>
    %214 = arith.mulf %211, %213 : vector<2x384xf32>
    %c0_93 = arith.constant 0 : index
    %c0_94 = arith.constant 0 : index
    %215 = vector.load %arg26[%c0_93, %c0_94] : memref<1x384xf32, #tpu.memory_space<vmem>>, vector<1x384xf32>
    %216 = vector.broadcast %215 : vector<1x384xf32> to vector<2x384xf32>
    %217 = arith.addf %214, %216 : vector<2x384xf32>
    %cst_95 = arith.constant 0.000000e+00 : f32
    %218 = vector.broadcast %cst_95 : f32 to vector<2x384xf32>
    %219 = arith.maximumf %217, %218 : vector<2x384xf32>
    %cst_96 = arith.constant 0.000000e+00 : f32
    %220 = vector.shape_cast %187 : vector<1x384xi1> to vector<1x384xi1>
    %221 = vector.broadcast %220 : vector<1x384xi1> to vector<2x384xi1>
    %222 = vector.broadcast %cst_96 : f32 to vector<2x384xf32>
    %223 = arith.select %221, %219, %222 : vector<2x384xi1>, vector<2x384xf32>
    %c0_97 = arith.constant 0 : index
    %c0_98 = arith.constant 0 : index
    %224 = vector.load %arg27[%c0_97, %c0_98] : memref<2x384xf32, #tpu.memory_space<vmem>>, vector<2x384xf32>
    tpu.vector_store %arg27[%c0_97, %c0_98], %223 {strides = array<i32>} : memref<2x384xf32, #tpu.memory_space<vmem>>, vector<2x384xf32>,
    return
  }
  func.func @transform_0(%arg0: i32) -> (i32, i32, i32) {
    %c0_i32 = arith.constant 0 : i32
    %c0_i32_0 = arith.constant 0 : i32
    %c0_i32_1 = arith.constant 0 : i32
    %c0_i32_2 = arith.constant 0 : i32
    return %c0_i32, %c0_i32_0, %c0_i32_1 : i32, i32, i32
  }
  func.func @transform_1(%arg0: i32) -> (i32, i32, i32) {
    %c0_i32 = arith.constant 0 : i32
    %c0_i32_0 = arith.constant 0 : i32
    %c0_i32_1 = arith.constant 0 : i32
    %c0_i32_2 = arith.constant 0 : i32
    return %c0_i32, %c0_i32_0, %c0_i32_1 : i32, i32, i32
  }
  func.func @transform_2(%arg0: i32) -> (i32, i32) {
    %c0_i32 = arith.constant 0 : i32
    %c0_i32_0 = arith.constant 0 : i32
    %c0_i32_1 = arith.constant 0 : i32
    return %c0_i32, %c0_i32_0 : i32, i32
  }
  func.func @transform_3(%arg0: i32) -> (i32, i32) {
    %c0_i32 = arith.constant 0 : i32
    %c0_i32_0 = arith.constant 0 : i32
    %c0_i32_1 = arith.constant 0 : i32
    return %c0_i32, %c0_i32_0 : i32, i32
  }
  func.func @transform_4(%arg0: i32) -> (i32, i32) {
    %c0_i32 = arith.constant 0 : i32
    %c0_i32_0 = arith.constant 0 : i32
    %c0_i32_1 = arith.constant 0 : i32
    return %c0_i32, %c0_i32_0 : i32, i32
  }
  func.func @transform_5(%arg0: i32) -> (i32, i32) {
    %c0_i32 = arith.constant 0 : i32
    %c0_i32_0 = arith.constant 0 : i32
    %c0_i32_1 = arith.constant 0 : i32
    return %c0_i32, %c0_i32_0 : i32, i32
  }
  func.func @transform_6(%arg0: i32) -> (i32, i32) {
    %c0_i32 = arith.constant 0 : i32
    %c0_i32_0 = arith.constant 0 : i32
    %c0_i32_1 = arith.constant 0 : i32
    return %c0_i32, %c0_i32_0 : i32, i32
  }
  func.func @transform_7(%arg0: i32) -> (i32, i32) {
    %c0_i32 = arith.constant 0 : i32
    %c0_i32_0 = arith.constant 0 : i32
    %c0_i32_1 = arith.constant 0 : i32
    return %c0_i32, %c0_i32_0 : i32, i32
  }
  func.func @transform_8(%arg0: i32) -> (i32, i32) {
    %c0_i32 = arith.constant 0 : i32
    %c0_i32_0 = arith.constant 0 : i32
    %c0_i32_1 = arith.constant 0 : i32
    return %c0_i32, %c0_i32_0 : i32, i32
  }
  func.func @transform_9(%arg0: i32) -> (i32, i32) {
    %c0_i32 = arith.constant 0 : i32
    %c0_i32_0 = arith.constant 0 : i32
    %c0_i32_1 = arith.constant 0 : i32
    return %c0_i32, %c0_i32_0 : i32, i32
  }
  func.func @transform_10(%arg0: i32) -> (i32, i32) {
    %c0_i32 = arith.constant 0 : i32
    %c0_i32_0 = arith.constant 0 : i32
    %c0_i32_1 = arith.constant 0 : i32
    return %c0_i32, %c0_i32_0 : i32, i32
  }
  func.func @transform_11(%arg0: i32) -> (i32, i32) {
    %c0_i32 = arith.constant 0 : i32
    %c0_i32_0 = arith.constant 0 : i32
    %c0_i32_1 = arith.constant 0 : i32
    return %c0_i32, %c0_i32_0 : i32, i32
  }
  func.func @transform_12(%arg0: i32) -> (i32, i32) {
    %c0_i32 = arith.constant 0 : i32
    %c0_i32_0 = arith.constant 0 : i32
    %c0_i32_1 = arith.constant 0 : i32
    return %c0_i32, %c0_i32_0 : i32, i32
  }
  func.func @transform_13(%arg0: i32) -> (i32, i32) {
    %c0_i32 = arith.constant 0 : i32
    %c0_i32_0 = arith.constant 0 : i32
    %c0_i32_1 = arith.constant 0 : i32
    return %c0_i32, %c0_i32_0 : i32, i32
  }
  func.func @transform_14(%arg0: i32) -> (i32, i32) {
    %c0_i32 = arith.constant 0 : i32
    %c0_i32_0 = arith.constant 0 : i32
    %c0_i32_1 = arith.constant 0 : i32
    return %c0_i32, %c0_i32_0 : i32, i32
  }
  func.func @transform_15(%arg0: i32) -> (i32, i32) {
    %c0_i32 = arith.constant 0 : i32
    %c0_i32_0 = arith.constant 0 : i32
    %c0_i32_1 = arith.constant 0 : i32
    return %c0_i32, %c0_i32_0 : i32, i32
  }
  func.func @transform_16(%arg0: i32) -> (i32, i32) {
    %c0_i32 = arith.constant 0 : i32
    %c0_i32_0 = arith.constant 0 : i32
    %c0_i32_1 = arith.constant 0 : i32
    return %c0_i32, %c0_i32_0 : i32, i32
  }
  func.func @transform_17(%arg0: i32) -> (i32, i32) {
    %c0_i32 = arith.constant 0 : i32
    %c0_i32_0 = arith.constant 0 : i32
    %c0_i32_1 = arith.constant 0 : i32
    return %c0_i32, %c0_i32_0 : i32, i32
  }
  func.func @transform_18(%arg0: i32) -> (i32, i32) {
    %c0_i32 = arith.constant 0 : i32
    %c0_i32_0 = arith.constant 0 : i32
    %c0_i32_1 = arith.constant 0 : i32
    return %c0_i32, %c0_i32_0 : i32, i32
  }
  func.func @transform_19(%arg0: i32) -> (i32, i32) {
    %c0_i32 = arith.constant 0 : i32
    %c0_i32_0 = arith.constant 0 : i32
    %c0_i32_1 = arith.constant 0 : i32
    return %c0_i32, %c0_i32_0 : i32, i32
  }
  func.func @transform_20(%arg0: i32) -> (i32, i32) {
    %c0_i32 = arith.constant 0 : i32
    %c0_i32_0 = arith.constant 0 : i32
    %c0_i32_1 = arith.constant 0 : i32
    return %c0_i32, %c0_i32_0 : i32, i32
  }
  func.func @transform_21(%arg0: i32) -> (i32, i32) {
    %c0_i32 = arith.constant 0 : i32
    %c0_i32_0 = arith.constant 0 : i32
    %c0_i32_1 = arith.constant 0 : i32
    return %c0_i32, %c0_i32_0 : i32, i32
  }
  func.func @transform_22(%arg0: i32) -> (i32, i32) {
    %c0_i32 = arith.constant 0 : i32
    %c0_i32_0 = arith.constant 0 : i32
    %c0_i32_1 = arith.constant 0 : i32
    return %c0_i32, %c0_i32_0 : i32, i32
  }
  func.func @transform_23(%arg0: i32) -> (i32, i32) {
    %c0_i32 = arith.constant 0 : i32
    %c0_i32_0 = arith.constant 0 : i32
    %c0_i32_1 = arith.constant 0 : i32
    return %c0_i32, %c0_i32_0 : i32, i32
  }
  func.func @transform_24(%arg0: i32) -> (i32, i32) {
    %c0_i32 = arith.constant 0 : i32
    %c0_i32_0 = arith.constant 0 : i32
    %c0_i32_1 = arith.constant 0 : i32
    return %c0_i32, %c0_i32_0 : i32, i32
  }
  func.func @transform_25(%arg0: i32) -> (i32, i32) {
    %c0_i32 = arith.constant 0 : i32
    %c0_i32_0 = arith.constant 0 : i32
    %c0_i32_1 = arith.constant 0 : i32
    return %c0_i32, %c0_i32_0 : i32, i32
  }
  func.func @transform_26(%arg0: i32) -> (i32, i32) {
    %c0_i32 = arith.constant 0 : i32
    %c0_i32_0 = arith.constant 0 : i32
    %c0_i32_1 = arith.constant 0 : i32
    return %c0_i32, %c0_i32_0 : i32, i32
  }
}

</mosaic_0001>

<llo_original>
// kernel: vectornet_loss.1
$region0: #{vectornet_loss.1}
  #allocation0 [shape = 'u32[]', space=smem, size = 0x4, offset = 0x4, fixed_abs, tag = 'smem constant byte address 0x4 - core index']
  #allocation1 [shape = 'u32[144,128]{1,0:T(1,128)}', space=vmem, size = 0x12000, scoped, tag = 'internal scratch']
  %s0 = inlined_call_operand.vmem [shape: bf16[8,8,32], index: 0, kind: input, shape index: {}]
  %s1 = inlined_call_operand.vmem [shape: s32[8,1,1], index: 1, kind: input, shape index: {}]
  %s2 = inlined_call_operand.vmem [shape: bf16[32,16], index: 2, kind: input, shape index: {}]
  %s3 = inlined_call_operand.vmem [shape: f32[1,16], index: 3, kind: input, shape index: {}]
  %s4 = inlined_call_operand.hbm [shape: f32[1,16], index: 4, kind: input, shape index: {}]
  %s5 = inlined_call_operand.hbm [shape: f32[1,16], index: 5, kind: input, shape index: {}]
  %s6 = inlined_call_operand.hbm [shape: bf16[16,16], index: 6, kind: input, shape index: {}]
  %s7 = inlined_call_operand.hbm [shape: bf16[16,16], index: 7, kind: input, shape index: {}]
  %s8 = inlined_call_operand.hbm [shape: f32[1,16], index: 8, kind: input, shape index: {}]
  %s9 = inlined_call_operand.hbm [shape: f32[1,16], index: 9, kind: input, shape index: {}]
  %s10 = inlined_call_operand.hbm [shape: f32[1,16], index: 10, kind: input, shape index: {}]
  %s11 = inlined_call_operand.hbm [shape: bf16[16,16], index: 11, kind: input, shape index: {}]
  %s12 = inlined_call_operand.hbm [shape: bf16[16,16], index: 12, kind: input, shape index: {}]
  %s13 = inlined_call_operand.hbm [shape: f32[1,16], index: 13, kind: input, shape index: {}]
  %s14 = inlined_call_operand.hbm [shape: f32[1,16], index: 14, kind: input, shape index: {}]
  %s15 = inlined_call_operand.hbm [shape: f32[1,16], index: 15, kind: input, shape index: {}]
  %s16 = inlined_call_operand.vmem [shape: bf16[32,32], index: 16, kind: input, shape index: {}]
  %s17 = inlined_call_operand.hbm [shape: f32[1,32], index: 17, kind: input, shape index: {}]
  %s18 = inlined_call_operand.vmem [shape: bf16[32,32], index: 18, kind: input, shape index: {}]
  %s19 = inlined_call_operand.hbm [shape: f32[1,32], index: 19, kind: input, shape index: {}]
  %s20 = inlined_call_operand.hbm [shape: bf16[32,32], index: 20, kind: input, shape index: {}]
  %s21 = inlined_call_operand.hbm [shape: f32[1,32], index: 21, kind: input, shape index: {}]
  %s22 = inlined_call_operand.hbm [shape: bf16[32,384], index: 22, kind: input, shape index: {}]
  %s23 = inlined_call_operand.hbm [shape: f32[1,384], index: 23, kind: input, shape index: {}]
  %s24 = inlined_call_operand.hbm [shape: f32[1,384], index: 24, kind: input, shape index: {}]
  %s25 = inlined_call_operand.hbm [shape: f32[1,384], index: 25, kind: input, shape index: {}]
  %s26 = inlined_call_operand.vmem [shape: f32[2,384], index: 26, kind: output, shape index: {}]
  %s27 = sld [smem:[#allocation0]]
  $region194: #{vectornet_loss.1} parent=0
    _
  %s29 = ssub.s32 1, %s27
  %s30 = scalar_select 0, %s29, %s27
  $region1: #{vectornet_loss.1} parent=0
    #allocation2 [shape = 'u8[512]{0}', space=vmem, size = 0x400, scoped, tag = 'input window, operand 4, single buffered']
    #allocation3 [shape = 's32[1]{0}', space=sflag, size = 0x4, scoped, tag = 'scoped memory for vectornet_loss.1']
    #allocation4 [shape = 'u8[512]{0}', space=vmem, size = 0x400, scoped, tag = 'input window, operand 5, single buffered']
    #allocation5 [shape = 's32[1]{0}', space=sflag, size = 0x4, scoped, tag = 'scoped memory for vectornet_loss.1']
    #allocation6 [shape = 'u8[4096]{0}', space=vmem, size = 0x1000, scoped, tag = 'input window, operand 6, single buffered']
    #allocation7 [shape = 'u8[4096]{0}', space=vmem, size = 0x1000, scoped, tag = 'input window, operand 7, single buffered']
    #allocation8 [shape = 's32[1]{0}', space=sflag, size = 0x4, scoped, tag = 'scoped memory for vectornet_loss.1']
    #allocation9 [shape = 'u8[512]{0}', space=vmem, size = 0x400, scoped, tag = 'input window, operand 8, single buffered']
    #allocation10 [shape = 'u8[512]{0}', space=vmem, size = 0x400, scoped, tag = 'input window, operand 9, single buffered']
    #allocation11 [shape = 's32[1]{0}', space=sflag, size = 0x4, scoped, tag = 'scoped memory for vectornet_loss.1']
    #allocation12 [shape = 'u8[512]{0}', space=vmem, size = 0x400, scoped, tag = 'input window, operand 10, single buffered']
    #allocation13 [shape = 'u8[4096]{0}', space=vmem, size = 0x1000, scoped, tag = 'input window, operand 11, single buffered']
    #allocation14 [shape = 's32[1]{0}', space=sflag, size = 0x4, scoped, tag = 'scoped memory for vectornet_loss.1']
    #allocation15 [shape = 'u8[4096]{0}', space=vmem, size = 0x1000, scoped, tag = 'input window, operand 12, single buffered']
    #allocation16 [shape = 'u8[512]{0}', space=vmem, size = 0x400, scoped, tag = 'input window, operand 13, single buffered']
    #allocation17 [shape = 's32[1]{0}', space=sflag, size = 0x4, scoped, tag = 'scoped memory for vectornet_loss.1']
    #allocation18 [shape = 'u8[512]{0}', space=vmem, size = 0x400, scoped, tag = 'input window, operand 14, single buffered']
    #allocation19 [shape = 'u8[512]{0}', space=vmem, size = 0x400, scoped, tag = 'input window, operand 15, single buffered']
    #allocation20 [shape = 's32[1]{0}', space=sflag, size = 0x4, scoped, tag = 'scoped memory for vectornet_loss.1']
    #allocation21 [shape = 'u8[512]{0}', space=vmem, size = 0x400, scoped, tag = 'input window, operand 17, single buffered']
    #allocation22 [shape = 'u8[512]{0}', space=vmem, size = 0x400, scoped, tag = 'input window, operand 19, single buffered']
    #allocation23 [shape = 's32[1]{0}', space=sflag, size = 0x4, scoped, tag = 'scoped memory for vectornet_loss.1']
    #allocation24 [shape = 'u8[8192]{0}', space=vmem, size = 0x2000, scoped, tag = 'input window, operand 20, single buffered']
    #allocation25 [shape = 'u8[512]{0}', space=vmem, size = 0x400, scoped, tag = 'input window, operand 21, single buffered']
    #allocation26 [shape = 's32[1]{0}', space=sflag, size = 0x4, scoped, tag = 'scoped memory for vectornet_loss.1']
    #allocation27 [shape = 'u8[24576]{0}', space=vmem, size = 0x6000, scoped, tag = 'input window, operand 22, single buffered']
    #allocation28 [shape = 'u8[1536]{0}', space=vmem, size = 0x800, scoped, tag = 'input window, operand 23, single buffered']
    #allocation29 [shape = 's32[1]{0}', space=sflag, size = 0x4, scoped, tag = 'scoped memory for vectornet_loss.1']
    #allocation30 [shape = 'u8[1536]{0}', space=vmem, size = 0x800, scoped, tag = 'input window, operand 24, single buffered']
    #allocation31 [shape = 'u8[1536]{0}', space=vmem, size = 0x800, scoped, tag = 'input window, operand 25, single buffered']
    #allocation32 [shape = 's32[1]{0}', space=sflag, size = 0x4, scoped, tag = 'scoped memory for vectornet_loss.1']
    %31 = vsyncpa [#allocation3], 0
    %32 = vsyncpa [#allocation5], 0
    %33 = vsyncpa [#allocation8], 0
    %34 = vsyncpa [#allocation11], 0
    %35 = vsyncpa [#allocation14], 0
    %36 = vsyncpa [#allocation17], 0
    %37 = vsyncpa [#allocation20], 0
    %38 = vsyncpa [#allocation23], 0
    %39 = vsyncpa [#allocation26], 0
    %40 = vsyncpa [#allocation29], 0
    %41 = vsyncpa [#allocation32], 0
    // Predicated region
    $region2: #{vectornet_loss.1} parent=1 // pred_check
      _
    $region3: #{vectornet_loss.1} parent=1 // pred_check_branch
      %43 = sbr.rel (0) target = $region5
    $region4: #{vectornet_loss.1} parent=1 // pred_region
      _
    $region5: #{vectornet_loss.1} parent=1 // pred_fallthru
      _
    // Predicated region
    $region6: #{vectornet_loss.1} parent=1 // pred_check
      _
    $region7: #{vectornet_loss.1} parent=1 // pred_check_branch
      %45 = sbr.rel (0) target = $region9
    $region8: #{vectornet_loss.1} parent=1 // pred_region
      _
    $region9: #{vectornet_loss.1} parent=1 // pred_fallthru
      _
    // Predicated region
    $region10: #{vectornet_loss.1} parent=1 // pred_check
      _
    $region11: #{vectornet_loss.1} parent=1 // pred_check_branch
      %47 = sbr.rel (0) target = $region13
    $region12: #{vectornet_loss.1} parent=1 // pred_region
      _
    $region13: #{vectornet_loss.1} parent=1 // pred_fallthru
      _
    // Predicated region
    $region14: #{vectornet_loss.1} parent=1 // pred_check
      _
    $region15: #{vectornet_loss.1} parent=1 // pred_check_branch
      %49 = sbr.rel (0) target = $region17
    $region16: #{vectornet_loss.1} parent=1 // pred_region
      _
    $region17: #{vectornet_loss.1} parent=1 // pred_fallthru
      _
    // Predicated region
    $region18: #{vectornet_loss.1} parent=1 // pred_check
      _
    $region19: #{vectornet_loss.1} parent=1 // pred_check_branch
      %51 = sbr.rel (0) target = $region21
    $region20: #{vectornet_loss.1} parent=1 // pred_region
      %s53 = ssub.s32 16, 16
      %54 = vsyncadd [#allocation3], %s53
      %s56 = sshll.u32 [#allocation2], 4
      %s57 = int_to_ptr.vmem [resolvable:$true] %s56
      %59 = dma.hbm_to_vmem [thread:$0]  %s4, 16, %s57, [#allocation3]
    $region21: #{vectornet_loss.1} parent=1 // pred_fallthru
      _
    // Predicated region
    $region22: #{vectornet_loss.1} parent=1 // pred_check
      _
    $region23: #{vectornet_loss.1} parent=1 // pred_check_branch
      %61 = sbr.rel (0) target = $region25
    $region24: #{vectornet_loss.1} parent=1 // pred_region
      %s63 = ssub.s32 16, 16
      %64 = vsyncadd [#allocation5], %s63
      %s66 = sshll.u32 [#allocation4], 4
      %s67 = int_to_ptr.vmem [resolvable:$true] %s66
      %69 = dma.hbm_to_vmem [thread:$0]  %s5, 16, %s67, [#allocation5]
    $region25: #{vectornet_loss.1} parent=1 // pred_fallthru
      _
    // Predicated region
    $region26: #{vectornet_loss.1} parent=1 // pred_check
      _
    $region27: #{vectornet_loss.1} parent=1 // pred_check_branch
      %71 = sbr.rel (0) target = $region29
    $region28: #{vectornet_loss.1} parent=1 // pred_region
      %s73 = ssub.s32 128, 128
      %74 = vsyncadd [#allocation5], %s73
      %s75 = sshll.u32 [#allocation6], 4
      %s76 = int_to_ptr.vmem [resolvable:$true] %s75
      %81 = dma.hbm_to_vmem [thread:$0]  %s6, 128, %s76, [#allocation5], 64, 64, 4
    $region29: #{vectornet_loss.1} parent=1 // pred_fallthru
      _
    // Predicated region
    $region30: #{vectornet_loss.1} parent=1 // pred_check
      _
    $region31: #{vectornet_loss.1} parent=1 // pred_check_branch
      %83 = sbr.rel (0) target = $region33
    $region32: #{vectornet_loss.1} parent=1 // pred_region
      %s85 = ssub.s32 128, 128
      %86 = vsyncadd [#allocation8], %s85
      %s87 = sshll.u32 [#allocation7], 4
      %s88 = int_to_ptr.vmem [resolvable:$true] %s87
      %93 = dma.hbm_to_vmem [thread:$0]  %s7, 128, %s88, [#allocation8], 64, 64, 4
    $region33: #{vectornet_loss.1} parent=1 // pred_fallthru
      _
    // Predicated region
    $region34: #{vectornet_loss.1} parent=1 // pred_check
      _
    $region35: #{vectornet_loss.1} parent=1 // pred_check_branch
      %95 = sbr.rel (0) target = $region37
    $region36: #{vectornet_loss.1} parent=1 // pred_region
      %s97 = ssub.s32 16, 16
      %98 = vsyncadd [#allocation8], %s97
      %s100 = sshll.u32 [#allocation9], 4
      %s101 = int_to_ptr.vmem [resolvable:$true] %s100
      %103 = dma.hbm_to_vmem [thread:$0]  %s8, 16, %s101, [#allocation8]
    $region37: #{vectornet_loss.1} parent=1 // pred_fallthru
      _
    // Predicated region
    $region38: #{vectornet_loss.1} parent=1 // pred_check
      _
    $region39: #{vectornet_loss.1} parent=1 // pred_check_branch
      %105 = sbr.rel (0) target = $region41
    $region40: #{vectornet_loss.1} parent=1 // pred_region
      %s107 = ssub.s32 16, 16
      %108 = vsyncadd [#allocation11], %s107
      %s110 = sshll.u32 [#allocation10], 4
      %s111 = int_to_ptr.vmem [resolvable:$true] %s110
      %113 = dma.hbm_to_vmem [thread:$0]  %s9, 16, %s111, [#allocation11]
    $region41: #{vectornet_loss.1} parent=1 // pred_fallthru
      _
    // Predicated region
    $region42: #{vectornet_loss.1} parent=1 // pred_check
      _
    $region43: #{vectornet_loss.1} parent=1 // pred_check_branch
      %115 = sbr.rel (0) target = $region45
    $region44: #{vectornet_loss.1} parent=1 // pred_region
      %s117 = ssub.s32 16, 16
      %118 = vsyncadd [#allocation11], %s117
      %s120 = sshll.u32 [#allocation12], 4
      %s121 = int_to_ptr.vmem [resolvable:$true] %s120
      %123 = dma.hbm_to_vmem [thread:$0]  %s10, 16, %s121, [#allocation11]
    $region45: #{vectornet_loss.1} parent=1 // pred_fallthru
      _
    // Predicated region
    $region46: #{vectornet_loss.1} parent=1 // pred_check
      _
    $region47: #{vectornet_loss.1} parent=1 // pred_check_branch
      %125 = sbr.rel (0) target = $region49
    $region48: #{vectornet_loss.1} parent=1 // pred_region
      %s127 = ssub.s32 128, 128
      %128 = vsyncadd [#allocation14], %s127
      %s129 = sshll.u32 [#allocation13], 4
      %s130 = int_to_ptr.vmem [resolvable:$true] %s129
      %135 = dma.hbm_to_vmem [thread:$0]  %s11, 128, %s130, [#allocation14], 64, 64, 4
    $region49: #{vectornet_loss.1} parent=1 // pred_fallthru
      _
    // Predicated region
    $region50: #{vectornet_loss.1} parent=1 // pred_check
      _
    $region51: #{vectornet_loss.1} parent=1 // pred_check_branch
      %137 = sbr.rel (0) target = $region53
    $region52: #{vectornet_loss.1} parent=1 // pred_region
      %s139 = ssub.s32 128, 128
      %140 = vsyncadd [#allocation14], %s139
      %s141 = sshll.u32 [#allocation15], 4
      %s142 = int_to_ptr.vmem [resolvable:$true] %s141
      %147 = dma.hbm_to_vmem [thread:$0]  %s12, 128, %s142, [#allocation14], 64, 64, 4
    $region53: #{vectornet_loss.1} parent=1 // pred_fallthru
      _
    // Predicated region
    $region54: #{vectornet_loss.1} parent=1 // pred_check
      _
    $region55: #{vectornet_loss.1} parent=1 // pred_check_branch
      %149 = sbr.rel (0) target = $region57
    $region56: #{vectornet_loss.1} parent=1 // pred_region
      %s151 = ssub.s32 16, 16
      %152 = vsyncadd [#allocation17], %s151
      %s154 = sshll.u32 [#allocation16], 4
      %s155 = int_to_ptr.vmem [resolvable:$true] %s154
      %157 = dma.hbm_to_vmem [thread:$0]  %s13, 16, %s155, [#allocation17]
    $region57: #{vectornet_loss.1} parent=1 // pred_fallthru
      _
    // Predicated region
    $region58: #{vectornet_loss.1} parent=1 // pred_check
      _
    $region59: #{vectornet_loss.1} parent=1 // pred_check_branch
      %159 = sbr.rel (0) target = $region61
    $region60: #{vectornet_loss.1} parent=1 // pred_region
      %s161 = ssub.s32 16, 16
      %162 = vsyncadd [#allocation17], %s161
      %s164 = sshll.u32 [#allocation18], 4
      %s165 = int_to_ptr.vmem [resolvable:$true] %s164
      %167 = dma.hbm_to_vmem [thread:$0]  %s14, 16, %s165, [#allocation17]
    $region61: #{vectornet_loss.1} parent=1 // pred_fallthru
      _
    // Predicated region
    $region62: #{vectornet_loss.1} parent=1 // pred_check
      _
    $region63: #{vectornet_loss.1} parent=1 // pred_check_branch
      %169 = sbr.rel (0) target = $region65
    $region64: #{vectornet_loss.1} parent=1 // pred_region
      %s171 = ssub.s32 16, 16
      %172 = vsyncadd [#allocation20], %s171
      %s174 = sshll.u32 [#allocation19], 4
      %s175 = int_to_ptr.vmem [resolvable:$true] %s174
      %177 = dma.hbm_to_vmem [thread:$0]  %s15, 16, %s175, [#allocation20]
    $region65: #{vectornet_loss.1} parent=1 // pred_fallthru
      _
    // Predicated region
    $region66: #{vectornet_loss.1} parent=1 // pred_check
      _
    $region67: #{vectornet_loss.1} parent=1 // pred_check_branch
      %179 = sbr.rel (0) target = $region69
    $region68: #{vectornet_loss.1} parent=1 // pred_region
      _
    $region69: #{vectornet_loss.1} parent=1 // pred_fallthru
      _
    // Predicated region
    $region70: #{vectornet_loss.1} parent=1 // pred_check
      _
    $region71: #{vectornet_loss.1} parent=1 // pred_check_branch
      %181 = sbr.rel (0) target = $region73
    $region72: #{vectornet_loss.1} parent=1 // pred_region
      %s183 = ssub.s32 16, 16
      %184 = vsyncadd [#allocation20], %s183
      %s186 = sshll.u32 [#allocation21], 4
      %s187 = int_to_ptr.vmem [resolvable:$true] %s186
      %189 = dma.hbm_to_vmem [thread:$0]  %s17, 16, %s187, [#allocation20]
    $region73: #{vectornet_loss.1} parent=1 // pred_fallthru
      _
    // Predicated region
    $region74: #{vectornet_loss.1} parent=1 // pred_check
      _
    $region75: #{vectornet_loss.1} parent=1 // pred_check_branch
      %191 = sbr.rel (0) target = $region77
    $region76: #{vectornet_loss.1} parent=1 // pred_region
      _
    $region77: #{vectornet_loss.1} parent=1 // pred_fallthru
      _
    // Predicated region
    $region78: #{vectornet_loss.1} parent=1 // pred_check
      _
    $region79: #{vectornet_loss.1} parent=1 // pred_check_branch
      %193 = sbr.rel (0) target = $region81
    $region80: #{vectornet_loss.1} parent=1 // pred_region
      %s195 = ssub.s32 16, 16
      %196 = vsyncadd [#allocation23], %s195
      %s198 = sshll.u32 [#allocation22], 4
      %s199 = int_to_ptr.vmem [resolvable:$true] %s198
      %201 = dma.hbm_to_vmem [thread:$0]  %s19, 16, %s199, [#allocation23]
    $region81: #{vectornet_loss.1} parent=1 // pred_fallthru
      _
    // Predicated region
    $region82: #{vectornet_loss.1} parent=1 // pred_check
      _
    $region83: #{vectornet_loss.1} parent=1 // pred_check_branch
      %203 = sbr.rel (0) target = $region85
    $region84: #{vectornet_loss.1} parent=1 // pred_region
      %s205 = ssub.s32 256, 256
      %206 = vsyncadd [#allocation23], %s205
      %s207 = sshll.u32 [#allocation24], 4
      %s208 = int_to_ptr.vmem [resolvable:$true] %s207
      %213 = dma.hbm_to_vmem [thread:$0]  %s20, 256, %s208, [#allocation23], 64, 64, 4
    $region85: #{vectornet_loss.1} parent=1 // pred_fallthru
      _
    // Predicated region
    $region86: #{vectornet_loss.1} parent=1 // pred_check
      _
    $region87: #{vectornet_loss.1} parent=1 // pred_check_branch
      %215 = sbr.rel (0) target = $region89
    $region88: #{vectornet_loss.1} parent=1 // pred_region
      %s217 = ssub.s32 16, 16
      %218 = vsyncadd [#allocation26], %s217
      %s220 = sshll.u32 [#allocation25], 4
      %s221 = int_to_ptr.vmem [resolvable:$true] %s220
      %223 = dma.hbm_to_vmem [thread:$0]  %s21, 16, %s221, [#allocation26]
    $region89: #{vectornet_loss.1} parent=1 // pred_fallthru
      _
    // Predicated region
    $region90: #{vectornet_loss.1} parent=1 // pred_check
      _
    $region91: #{vectornet_loss.1} parent=1 // pred_check_branch
      %225 = sbr.rel (0) target = $region93
    $region92: #{vectornet_loss.1} parent=1 // pred_region
      %s227 = ssub.s32 768, 768
      %228 = vsyncadd [#allocation26], %s227
      %s229 = sshll.u32 [#allocation27], 4
      %s230 = int_to_ptr.vmem [resolvable:$true] %s229
      %235 = dma.hbm_to_vmem [thread:$0]  %s22, 768, %s230, [#allocation26], 192, 192, 12
    $region93: #{vectornet_loss.1} parent=1 // pred_fallthru
      _
    // Predicated region
    $region94: #{vectornet_loss.1} parent=1 // pred_check
      _
    $region95: #{vectornet_loss.1} parent=1 // pred_check_branch
      %237 = sbr.rel (0) target = $region97
    $region96: #{vectornet_loss.1} parent=1 // pred_region
      %s239 = ssub.s32 48, 48
      %240 = vsyncadd [#allocation29], %s239
      %s242 = sshll.u32 [#allocation28], 4
      %s243 = int_to_ptr.vmem [resolvable:$true] %s242
      %245 = dma.hbm_to_vmem [thread:$0]  %s23, 48, %s243, [#allocation29]
    $region97: #{vectornet_loss.1} parent=1 // pred_fallthru
      _
    // Predicated region
    $region98: #{vectornet_loss.1} parent=1 // pred_check
      _
    $region99: #{vectornet_loss.1} parent=1 // pred_check_branch
      %247 = sbr.rel (0) target = $region101
    $region100: #{vectornet_loss.1} parent=1 // pred_region
      %s249 = ssub.s32 48, 48
      %250 = vsyncadd [#allocation29], %s249
      %s252 = sshll.u32 [#allocation30], 4
      %s253 = int_to_ptr.vmem [resolvable:$true] %s252
      %255 = dma.hbm_to_vmem [thread:$0]  %s24, 48, %s253, [#allocation29]
    $region101: #{vectornet_loss.1} parent=1 // pred_fallthru
      _
    // Predicated region
    $region102: #{vectornet_loss.1} parent=1 // pred_check
      _
    $region103: #{vectornet_loss.1} parent=1 // pred_check_branch
      %257 = sbr.rel (0) target = $region105
    $region104: #{vectornet_loss.1} parent=1 // pred_region
      %s259 = ssub.s32 48, 48
      %260 = vsyncadd [#allocation32], %s259
      %s262 = sshll.u32 [#allocation31], 4
      %s263 = int_to_ptr.vmem [resolvable:$true] %s262
      %265 = dma.hbm_to_vmem [thread:$0]  %s25, 48, %s263, [#allocation32]
    $region105: #{vectornet_loss.1} parent=1 // pred_fallthru
      _
    // Predicated region
    $region106: #{vectornet_loss.1} parent=1 // pred_check
      _
    $region107: #{vectornet_loss.1} parent=1 // pred_check_branch
      %267 = sbr.rel (0) target = $region109
    $region108: #{vectornet_loss.1} parent=1 // pred_region
      %268 = dma.done [#allocation3], 16
    $region109: #{vectornet_loss.1} parent=1 // pred_fallthru
      _
    // Predicated region
    $region110: #{vectornet_loss.1} parent=1 // pred_check
      _
    $region111: #{vectornet_loss.1} parent=1 // pred_check_branch
      %270 = sbr.rel (0) target = $region113
    $region112: #{vectornet_loss.1} parent=1 // pred_region
      %271 = dma.done [#allocation5], 16
    $region113: #{vectornet_loss.1} parent=1 // pred_fallthru
      _
    // Predicated region
    $region114: #{vectornet_loss.1} parent=1 // pred_check
      _
    $region115: #{vectornet_loss.1} parent=1 // pred_check_branch
      %273 = sbr.rel (0) target = $region117
    $region116: #{vectornet_loss.1} parent=1 // pred_region
      %274 = dma.done [#allocation5], 128
    $region117: #{vectornet_loss.1} parent=1 // pred_fallthru
      _
    // Predicated region
    $region118: #{vectornet_loss.1} parent=1 // pred_check
      _
    $region119: #{vectornet_loss.1} parent=1 // pred_check_branch
      %276 = sbr.rel (0) target = $region121
    $region120: #{vectornet_loss.1} parent=1 // pred_region
      %277 = dma.done [#allocation8], 128
    $region121: #{vectornet_loss.1} parent=1 // pred_fallthru
      _
    // Predicated region
    $region122: #{vectornet_loss.1} parent=1 // pred_check
      _
    $region123: #{vectornet_loss.1} parent=1 // pred_check_branch
      %279 = sbr.rel (0) target = $region125
    $region124: #{vectornet_loss.1} parent=1 // pred_region
      %280 = dma.done [#allocation8], 16
    $region125: #{vectornet_loss.1} parent=1 // pred_fallthru
      _
    // Predicated region
    $region126: #{vectornet_loss.1} parent=1 // pred_check
      _
    $region127: #{vectornet_loss.1} parent=1 // pred_check_branch
      %282 = sbr.rel (0) target = $region129
    $region128: #{vectornet_loss.1} parent=1 // pred_region
      %283 = dma.done [#allocation11], 16
    $region129: #{vectornet_loss.1} parent=1 // pred_fallthru
      _
    // Predicated region
    $region130: #{vectornet_loss.1} parent=1 // pred_check
      _
    $region131: #{vectornet_loss.1} parent=1 // pred_check_branch
      %285 = sbr.rel (0) target = $region133
    $region132: #{vectornet_loss.1} parent=1 // pred_region
      %286 = dma.done [#allocation11], 16
    $region133: #{vectornet_loss.1} parent=1 // pred_fallthru
      _
    // Predicated region
    $region134: #{vectornet_loss.1} parent=1 // pred_check
      _
    $region135: #{vectornet_loss.1} parent=1 // pred_check_branch
      %288 = sbr.rel (0) target = $region137
    $region136: #{vectornet_loss.1} parent=1 // pred_region
      %289 = dma.done [#allocation14], 128
    $region137: #{vectornet_loss.1} parent=1 // pred_fallthru
      _
    // Predicated region
    $region138: #{vectornet_loss.1} parent=1 // pred_check
      _
    $region139: #{vectornet_loss.1} parent=1 // pred_check_branch
      %291 = sbr.rel (0) target = $region141
    $region140: #{vectornet_loss.1} parent=1 // pred_region
      %292 = dma.done [#allocation14], 128
    $region141: #{vectornet_loss.1} parent=1 // pred_fallthru
      _
    // Predicated region
    $region142: #{vectornet_loss.1} parent=1 // pred_check
      _
    $region143: #{vectornet_loss.1} parent=1 // pred_check_branch
      %294 = sbr.rel (0) target = $region145
    $region144: #{vectornet_loss.1} parent=1 // pred_region
      %295 = dma.done [#allocation17], 16
    $region145: #{vectornet_loss.1} parent=1 // pred_fallthru
      _
    // Predicated region
    $region146: #{vectornet_loss.1} parent=1 // pred_check
      _
    $region147: #{vectornet_loss.1} parent=1 // pred_check_branch
      %297 = sbr.rel (0) target = $region149
    $region148: #{vectornet_loss.1} parent=1 // pred_region
      %298 = dma.done [#allocation17], 16
    $region149: #{vectornet_loss.1} parent=1 // pred_fallthru
      _
    // Predicated region
    $region150: #{vectornet_loss.1} parent=1 // pred_check
      _
    $region151: #{vectornet_loss.1} parent=1 // pred_check_branch
      %300 = sbr.rel (0) target = $region153
    $region152: #{vectornet_loss.1} parent=1 // pred_region
      %301 = dma.done [#allocation20], 16
    $region153: #{vectornet_loss.1} parent=1 // pred_fallthru
      _
    // Predicated region
    $region154: #{vectornet_loss.1} parent=1 // pred_check
      _
    $region155: #{vectornet_loss.1} parent=1 // pred_check_branch
      %303 = sbr.rel (0) target = $region157
    $region156: #{vectornet_loss.1} parent=1 // pred_region
      %304 = dma.done [#allocation20], 16
    $region157: #{vectornet_loss.1} parent=1 // pred_fallthru
      _
    // Predicated region
    $region158: #{vectornet_loss.1} parent=1 // pred_check
      _
    $region159: #{vectornet_loss.1} parent=1 // pred_check_branch
      %306 = sbr.rel (0) target = $region161
    $region160: #{vectornet_loss.1} parent=1 // pred_region
      %307 = dma.done [#allocation23], 16
    $region161: #{vectornet_loss.1} parent=1 // pred_fallthru
      _
    // Predicated region
    $region162: #{vectornet_loss.1} parent=1 // pred_check
      _
    $region163: #{vectornet_loss.1} parent=1 // pred_check_branch
      %309 = sbr.rel (0) target = $region165
    $region164: #{vectornet_loss.1} parent=1 // pred_region
      %310 = dma.done [#allocation23], 256
    $region165: #{vectornet_loss.1} parent=1 // pred_fallthru
      _
    // Predicated region
    $region166: #{vectornet_loss.1} parent=1 // pred_check
      _
    $region167: #{vectornet_loss.1} parent=1 // pred_check_branch
      %312 = sbr.rel (0) target = $region169
    $region168: #{vectornet_loss.1} parent=1 // pred_region
      %313 = dma.done [#allocation26], 16
    $region169: #{vectornet_loss.1} parent=1 // pred_fallthru
      _
    // Predicated region
    $region170: #{vectornet_loss.1} parent=1 // pred_check
      _
    $region171: #{vectornet_loss.1} parent=1 // pred_check_branch
      %315 = sbr.rel (0) target = $region173
    $region172: #{vectornet_loss.1} parent=1 // pred_region
      %316 = dma.done [#allocation26], 768
    $region173: #{vectornet_loss.1} parent=1 // pred_fallthru
      _
    // Predicated region
    $region174: #{vectornet_loss.1} parent=1 // pred_check
      _
    $region175: #{vectornet_loss.1} parent=1 // pred_check_branch
      %318 = sbr.rel (0) target = $region177
    $region176: #{vectornet_loss.1} parent=1 // pred_region
      %319 = dma.done [#allocation29], 48
    $region177: #{vectornet_loss.1} parent=1 // pred_fallthru
      _
    // Predicated region
    $region178: #{vectornet_loss.1} parent=1 // pred_check
      _
    $region179: #{vectornet_loss.1} parent=1 // pred_check_branch
      %321 = sbr.rel (0) target = $region181
    $region180: #{vectornet_loss.1} parent=1 // pred_region
      %322 = dma.done [#allocation29], 48
    $region181: #{vectornet_loss.1} parent=1 // pred_fallthru
      _
    // Predicated region
    $region182: #{vectornet_loss.1} parent=1 // pred_check
      _
    $region183: #{vectornet_loss.1} parent=1 // pred_check_branch
      %324 = sbr.rel (0) target = $region185
    $region184: #{vectornet_loss.1} parent=1 // pred_region
      %325 = dma.done [#allocation32], 48
    $region185: #{vectornet_loss.1} parent=1 // pred_fallthru
      _
    %v327 = vlaneseq
    %v328 = vshrl.u32 %v327, 7
    %v329 = vld [vmem:[%s1] sm:$0x1]
    %v330 = vld [vmem:[%s1 + $0x1] sm:$0x1]
    %v331 = vld [vmem:[%s1 + $0x2] sm:$0x1]
    %v332 = vld [vmem:[%s1 + $0x3] sm:$0x1]
    %v333 = vld [vmem:[%s1 + $0x4] sm:$0x1]
    %v334 = vld [vmem:[%s1 + $0x5] sm:$0x1]
    %v335 = vld [vmem:[%s1 + $0x6] sm:$0x1]
    %v336 = vld [vmem:[%s1 + $0x7] sm:$0x1]
    %v337 = vlaneseq
    %v338 = vshrl.u32 %v337, 7
    %v339 = vsub.s32 0, %v338
    %v340 = vrot.slane %v329, %v339
    %v341 = vlaneseq
    %v342 = vshrl.u32 %v341, 7
    %v343 = vsub.s32 0, %v342
    %v344 = vrot.slane %v330, %v343
    %v345 = vlaneseq
    %v346 = vshrl.u32 %v345, 7
    %v347 = vsub.s32 0, %v346
    %v348 = vrot.slane %v331, %v347
    %v349 = vlaneseq
    %v350 = vshrl.u32 %v349, 7
    %v351 = vsub.s32 0, %v350
    %v352 = vrot.slane %v332, %v351
    %v353 = vlaneseq
    %v354 = vshrl.u32 %v353, 7
    %v355 = vsub.s32 0, %v354
    %v356 = vrot.slane %v333, %v355
    %v357 = vlaneseq
    %v358 = vshrl.u32 %v357, 7
    %v359 = vsub.s32 0, %v358
    %v360 = vrot.slane %v334, %v359
    %v361 = vlaneseq
    %v362 = vshrl.u32 %v361, 7
    %v363 = vsub.s32 0, %v362
    %v364 = vrot.slane %v335, %v363
    %v365 = vlaneseq
    %v366 = vshrl.u32 %v365, 7
    %v367 = vsub.s32 0, %v366
    %v368 = vrot.slane %v336, %v367
    %vm369 = vcmp.lt.s32.totalorder %v328, %v340
    %vm370 = vcmp.lt.s32.totalorder %v328, %v344
    %vm371 = vcmp.lt.s32.totalorder %v328, %v348
    %vm372 = vcmp.lt.s32.totalorder %v328, %v352
    %vm373 = vcmp.lt.s32.totalorder %v328, %v356
    %vm374 = vcmp.lt.s32.totalorder %v328, %v360
    %vm375 = vcmp.lt.s32.totalorder %v328, %v364
    %vm376 = vcmp.lt.s32.totalorder %v328, %v368
    %v377 = vld [vmem:[%s0] sm:$0xf]
    %v378 = vld [vmem:[%s0 + $0x4] sm:$0xf]
    %v379 = vld [vmem:[%s0 + $0x8] sm:$0xf]
    %v380 = vld [vmem:[%s0 + $0xc] sm:$0xf]
    %v381 = vld [vmem:[%s0 + $0x10] sm:$0xf]
    %v382 = vld [vmem:[%s0 + $0x14] sm:$0xf]
    %v383 = vld [vmem:[%s0 + $0x18] sm:$0xf]
    %v384 = vld [vmem:[%s0 + $0x1c] sm:$0xf]
    %v385 = vld [vmem:[%s2] sm:$0xf]
    %v386 = vld [vmem:[%s2 + $0x4] sm:$0xf]
    %v387 = vld [vmem:[%s2 + $0x8] sm:$0xf]
    %v388 = vld [vmem:[%s2 + $0xc] sm:$0xf]
    %v389 = vld [vmem:[%s3] sm:$0x1]
    %v391 = vlaneseq
    %v392 = vshrl.u32 %v391, 7
    %v393 = vsub.s32 0, %v392
    %v394 = vrot.slane %v389, %v393
    %v404 = vunpack.c.l.b16 %v377
    %v405 = vunpack.c.l.b16 %v378
    %v406 = vunpack.c.l.b16 %v379
    %v407 = vunpack.c.l.b16 %v380
    %v408 = vunpack.c.l.b16 %v381
    %v409 = vunpack.c.l.b16 %v382
    %v410 = vunpack.c.l.b16 %v383
    %v411 = vunpack.c.l.b16 %v384
    %v412 = vpack.c.b16 %v405, %v404
    %v413 = vpack.c.b16 %v407, %v406
    %v414 = vpack.c.b16 %v409, %v408
    %v415 = vpack.c.b16 %v411, %v410
    %v420 = vunpack.c.l.b16 %v385
    %v421 = vunpack.c.l.b16 %v386
    %v422 = vunpack.c.l.b16 %v387
    %v423 = vunpack.c.l.b16 %v388
    %v424 = vpack.c.b16 %v421, %v420
    %v425 = vpack.c.b16 %v423, %v422
    %vm428 = vcmask 261120
    %v430 = vsel %vm428, %v412, 0
    %v433 = vsel %vm428, %v413, 0
    %v436 = vsel %vm428, %v414, 0
    %v439 = vsel %vm428, %v415, 0
    %441 = vmatprep.subr.bf16.mxu0 0
    %442 = vmatpush1.bf16.msra.mxu0 0
    %443 = vmatprep.subr.bf16.mxu0 0
    %444 = vmatpush1.bf16.msra.mxu0 0
    %445 = vmatprep.subr.bf16.mxu0 0
    %446 = vmatpush1.bf16.msra.mxu0 0
    %447 = vmatprep.subr.bf16.mxu0 0
    %448 = vmatpush1.bf16.msra.mxu0 0
    %449 = vmatprep.subr.bf16.mxu0 0
    %450 = vmatpush1.bf16.msra.mxu0 0
    %451 = vmatprep.subr.bf16.mxu0 0
    %452 = vmatpush1.bf16.msra.mxu0 0
    %453 = vmatprep.subr.bf16.mxu0 0
    %454 = vmatpush1.bf16.msra.mxu0 %v425
    %455 = vmatprep.subr.bf16.mxu0 0
    %456 = vmatpush1.bf16.msra.mxu0 %v424
    %457 = vmatprep.subr.bf16.mxu0 0
    %458 = vmatpush2.bf16.msra.mxu0 0
    %459 = vmatprep.subr.bf16.mxu0 0
    %460 = vmatpush2.bf16.msra.mxu0 0
    %461 = vmatprep.subr.bf16.mxu0 0
    %462 = vmatpush2.bf16.msra.mxu0 0
    %463 = vmatprep.subr.bf16.mxu0 0
    %464 = vmatpush2.bf16.msra.mxu0 0
    %465 = vmatprep.subr.bf16.mxu0 0
    %466 = vmatpush2.bf16.msra.mxu0 0
    %467 = vmatprep.subr.bf16.mxu0 0
    %468 = vmatpush2.bf16.msra.mxu0 0
    %469 = vmatprep.subr.bf16.mxu0 0
    %470 = vmatpush2.bf16.msra.mxu0 0
    %471 = vmatprep.subr.bf16.mxu0 0
    %472 = vmatpush2.bf16.msra.mxu0 0
    %473 = vmatprep.mubr.bf16.mxu0 0
    %474 = vmatmul.mubr.bf16.gmra.mxu0 %v430
    %v475 = vpop.f32.mrf.mxu0
    %v476 = vadd.f32 %v394, %v475
    %v477 = vpop.f32.mrf.mxu0
    %v478 = vpop.f32.mrf.mxu0
    %v479 = vadd.f32 %v394, %v478
    %v480 = vpop.f32.mrf.mxu0
    %481 = vmatprep.mubr.bf16.mxu0 0
    %482 = vmatmul.mubr.bf16.gmra.mxu0 %v433
    %v483 = vpop.f32.mrf.mxu0
    %v484 = vadd.f32 %v394, %v483
    %v485 = vpop.f32.mrf.mxu0
    %v486 = vpop.f32.mrf.mxu0
    %v487 = vadd.f32 %v394, %v486
    %v488 = vpop.f32.mrf.mxu0
    %489 = vmatprep.mubr.bf16.mxu0 0
    %490 = vmatmul.mubr.bf16.gmra.mxu0 %v436
    %v491 = vpop.f32.mrf.mxu0
    %v492 = vadd.f32 %v394, %v491
    %v493 = vpop.f32.mrf.mxu0
    %v494 = vpop.f32.mrf.mxu0
    %v495 = vadd.f32 %v394, %v494
    %v496 = vpop.f32.mrf.mxu0
    %497 = vmatprep.mubr.bf16.mxu0 0
    %498 = vmatmul.mubr.bf16.gmra.mxu0 %v439
    %v499 = vpop.f32.mrf.mxu0
    %v500 = vadd.f32 %v394, %v499
    %v501 = vpop.f32.mrf.mxu0
    %v502 = vpop.f32.mrf.mxu0
    %v503 = vadd.f32 %v394, %v502
    %v504 = vpop.f32.mrf.mxu0
    %505 = vdwg.mxu0
    %v506 = vld [vmem:[#allocation2] sm:$0x1]
    %v507 = vld [vmem:[#allocation4] sm:$0x1]
    %vm508 = vcmask 130048
    %v509 = vsel %vm508, %v476, 0.0
    %510 = vadd.xlane.f32.xlu0 %v509
    %v511 = vpop.xlane.xlu0 %510
    %v512 = vsel %vm508, %v479, 0.0
    %513 = vadd.xlane.f32.xlu0 %v512
    %v514 = vpop.xlane.xlu0 %513
    %v515 = vsel %vm508, %v484, 0.0
    %516 = vadd.xlane.f32.xlu0 %v515
    %v517 = vpop.xlane.xlu0 %516
    %v518 = vsel %vm508, %v487, 0.0
    %519 = vadd.xlane.f32.xlu0 %v518
    %v520 = vpop.xlane.xlu0 %519
    %v521 = vsel %vm508, %v492, 0.0
    %522 = vadd.xlane.f32.xlu0 %v521
    %v523 = vpop.xlane.xlu0 %522
    %v524 = vsel %vm508, %v495, 0.0
    %525 = vadd.xlane.f32.xlu0 %v524
    %v526 = vpop.xlane.xlu0 %525
    %v527 = vsel %vm508, %v500, 0.0
    %528 = vadd.xlane.f32.xlu0 %v527
    %v529 = vpop.xlane.xlu0 %528
    %v530 = vsel %vm508, %v503, 0.0
    %531 = vadd.xlane.f32.xlu0 %v530
    %v532 = vpop.xlane.xlu0 %531
    %v533 = vrcp.pop 16.0
    %v534 = vmul.f32 %v511, %v533
    %v535 = vmul.f32 %v514, %v533
    %v536 = vmul.f32 %v517, %v533
    %v537 = vmul.f32 %v520, %v533
    %v538 = vmul.f32 %v523, %v533
    %v539 = vmul.f32 %v526, %v533
    %v540 = vmul.f32 %v529, %v533
    %v541 = vmul.f32 %v532, %v533
    %v542 = vsub.f32 %v476, %v534
    %v543 = vsub.f32 %v479, %v535
    %v544 = vsub.f32 %v484, %v536
    %v545 = vsub.f32 %v487, %v537
    %v546 = vsub.f32 %v492, %v538
    %v547 = vsub.f32 %v495, %v539
    %v548 = vsub.f32 %v500, %v540
    %v549 = vsub.f32 %v503, %v541
    %v550 = vmul.f32 %v542, %v542
    %v551 = vmul.f32 %v543, %v543
    %v552 = vmul.f32 %v544, %v544
    %v553 = vmul.f32 %v545, %v545
    %v554 = vmul.f32 %v546, %v546
    %v555 = vmul.f32 %v547, %v547
    %v556 = vmul.f32 %v548, %v548
    %v557 = vmul.f32 %v549, %v549
    %v558 = vsel %vm508, %v550, 0.0
    %559 = vadd.xlane.f32.xlu0 %v558
    %v560 = vpop.xlane.xlu0 %559
    %v561 = vsel %vm508, %v551, 0.0
    %562 = vadd.xlane.f32.xlu0 %v561
    %v563 = vpop.xlane.xlu0 %562
    %v564 = vsel %vm508, %v552, 0.0
    %565 = vadd.xlane.f32.xlu0 %v564
    %v566 = vpop.xlane.xlu0 %565
    %v567 = vsel %vm508, %v553, 0.0
    %568 = vadd.xlane.f32.xlu0 %v567
    %v569 = vpop.xlane.xlu0 %568
    %v570 = vsel %vm508, %v554, 0.0
    %571 = vadd.xlane.f32.xlu0 %v570
    %v572 = vpop.xlane.xlu0 %571
    %v573 = vsel %vm508, %v555, 0.0
    %574 = vadd.xlane.f32.xlu0 %v573
    %v575 = vpop.xlane.xlu0 %574
    %v576 = vsel %vm508, %v556, 0.0
    %577 = vadd.xlane.f32.xlu0 %v576
    %v578 = vpop.xlane.xlu0 %577
    %v579 = vsel %vm508, %v557, 0.0
    %580 = vadd.xlane.f32.xlu0 %v579
    %v581 = vpop.xlane.xlu0 %580
    %v582 = vmul.f32 %v560, %v533
    %v583 = vmul.f32 %v563, %v533
    %v584 = vmul.f32 %v566, %v533
    %v585 = vmul.f32 %v569, %v533
    %v586 = vmul.f32 %v572, %v533
    %v587 = vmul.f32 %v575, %v533
    %v588 = vmul.f32 %v578, %v533
    %v589 = vmul.f32 %v581, %v533
    %v590 = vadd.f32 %v582, 1e-05
    %v591 = vadd.f32 %v583, 1e-05
    %v592 = vadd.f32 %v584, 1e-05
    %v593 = vadd.f32 %v585, 1e-05
    %v594 = vadd.f32 %v586, 1e-05
    %v595 = vadd.f32 %v587, 1e-05
    %v596 = vadd.f32 %v588, 1e-05
    %v597 = vadd.f32 %v589, 1e-05
    %v598 = vrsqrt.pop %v590
    %v599 = vrsqrt.pop %v591
    %v600 = vrsqrt.pop %v592
    %v601 = vrsqrt.pop %v593
    %v602 = vrsqrt.pop %v594
    %v603 = vrsqrt.pop %v595
    %v604 = vrsqrt.pop %v596
    %v605 = vrsqrt.pop %v597
    %v606 = vmul.f32 %v542, %v598
    %v607 = vmul.f32 %v543, %v599
    %v608 = vmul.f32 %v544, %v600
    %v609 = vmul.f32 %v545, %v601
    %v610 = vmul.f32 %v546, %v602
    %v611 = vmul.f32 %v547, %v603
    %v612 = vmul.f32 %v548, %v604
    %v613 = vmul.f32 %v549, %v605
    %v615 = vlaneseq
    %v616 = vshrl.u32 %v615, 7
    %v617 = vsub.s32 0, %v616
    %v618 = vrot.slane %v506, %v617
    %v620 = vmul.f32 %v606, %v618
    %v621 = vmul.f32 %v607, %v618
    %v622 = vmul.f32 %v608, %v618
    %v623 = vmul.f32 %v609, %v618
    %v624 = vmul.f32 %v610, %v618
    %v625 = vmul.f32 %v611, %v618
    %v626 = vmul.f32 %v612, %v618
    %v627 = vmul.f32 %v613, %v618
    %v629 = vlaneseq
    %v630 = vshrl.u32 %v629, 7
    %v631 = vsub.s32 0, %v630
    %v632 = vrot.slane %v507, %v631
    %v634 = vadd.f32 %v620, %v632
    %v635 = vadd.f32 %v621, %v632
    %v636 = vadd.f32 %v622, %v632
    %v637 = vadd.f32 %v623, %v632
    %v638 = vadd.f32 %v624, %v632
    %v639 = vadd.f32 %v625, %v632
    %v640 = vadd.f32 %v626, %v632
    %v641 = vadd.f32 %v627, %v632
    %v642 = vmax.f32 %v634, 0.0
    %v643 = vmax.f32 %v635, 0.0
    %v644 = vmax.f32 %v636, 0.0
    %v645 = vmax.f32 %v637, 0.0
    %v646 = vmax.f32 %v638, 0.0
    %v647 = vmax.f32 %v639, 0.0
    %v648 = vmax.f32 %v640, 0.0
    %v649 = vmax.f32 %v641, 0.0
    %v650 = vsel %vm369, 1, 0
    %v651 = vsel %vm370, 1, 0
    %v652 = vsel %vm371, 1, 0
    %v653 = vsel %vm372, 1, 0
    %v654 = vsel %vm373, 1, 0
    %v655 = vsel %vm374, 1, 0
    %v656 = vsel %vm375, 1, 0
    %v657 = vsel %vm376, 1, 0
    %658 = vset.pattern.permute.xlu0 0
    %659 = vperm.xlu0 %658, %v650
    %v660 = vpop.permute.xlu0 %659
    %661 = vset.pattern.permute.xlu0 0
    %662 = vperm.xlu0 %661, %v651
    %v663 = vpop.permute.xlu0 %662
    %664 = vset.pattern.permute.xlu0 0
    %665 = vperm.xlu0 %664, %v652
    %v666 = vpop.permute.xlu0 %665
    %667 = vset.pattern.permute.xlu0 0
    %668 = vperm.xlu0 %667, %v653
    %v669 = vpop.permute.xlu0 %668
    %670 = vset.pattern.permute.xlu0 0
    %671 = vperm.xlu0 %670, %v654
    %v672 = vpop.permute.xlu0 %671
    %673 = vset.pattern.permute.xlu0 0
    %674 = vperm.xlu0 %673, %v655
    %v675 = vpop.permute.xlu0 %674
    %676 = vset.pattern.permute.xlu0 0
    %677 = vperm.xlu0 %676, %v656
    %v678 = vpop.permute.xlu0 %677
    %679 = vset.pattern.permute.xlu0 0
    %680 = vperm.xlu0 %679, %v657
    %v681 = vpop.permute.xlu0 %680
    %vm682 = vcmp.eq.s32.totalorder %v660, 1
    %vm683 = vcmp.eq.s32.totalorder %v663, 1
    %vm684 = vcmp.eq.s32.totalorder %v666, 1
    %vm685 = vcmp.eq.s32.totalorder %v669, 1
    %vm686 = vcmp.eq.s32.totalorder %v672, 1
    %vm687 = vcmp.eq.s32.totalorder %v675, 1
    %vm688 = vcmp.eq.s32.totalorder %v678, 1
    %vm689 = vcmp.eq.s32.totalorder %v681, 1
    %v690 = vsel %vm682, %v642, 0.0
    %v691 = vsel %vm683, %v643, 0.0
    %v692 = vsel %vm684, %v644, 0.0
    %v693 = vsel %vm685, %v645, 0.0
    %v694 = vsel %vm686, %v646, 0.0
    %v695 = vsel %vm687, %v647, 0.0
    %v696 = vsel %vm688, %v648, 0.0
    %v697 = vsel %vm689, %v649, 0.0
    %v698 = vsel %vm508, %v690, -inf
    %v699 = vrot.slane %v698, 4
    %v700 = vmax.f32 %v698, %v699
    %v701 = vrot.slane %v700, 2
    %v702 = vmax.f32 %v700, %v701
    %v703 = vrot.slane %v702, 1
    %v704 = vmax.f32 %v702, %v703
    %v705 = vsel %vm508, %v691, -inf
    %v706 = vrot.slane %v705, 4
    %v707 = vmax.f32 %v705, %v706
    %v708 = vrot.slane %v707, 2
    %v709 = vmax.f32 %v707, %v708
    %v710 = vrot.slane %v709, 1
    %v711 = vmax.f32 %v709, %v710
    %v712 = vsel %vm508, %v692, -inf
    %v713 = vrot.slane %v712, 4
    %v714 = vmax.f32 %v712, %v713
    %v715 = vrot.slane %v714, 2
    %v716 = vmax.f32 %v714, %v715
    %v717 = vrot.slane %v716, 1
    %v718 = vmax.f32 %v716, %v717
    %v719 = vsel %vm508, %v693, -inf
    %v720 = vrot.slane %v719, 4
    %v721 = vmax.f32 %v719, %v720
    %v722 = vrot.slane %v721, 2
    %v723 = vmax.f32 %v721, %v722
    %v724 = vrot.slane %v723, 1
    %v725 = vmax.f32 %v723, %v724
    %v726 = vsel %vm508, %v694, -inf
    %v727 = vrot.slane %v726, 4
    %v728 = vmax.f32 %v726, %v727
    %v729 = vrot.slane %v728, 2
    %v730 = vmax.f32 %v728, %v729
    %v731 = vrot.slane %v730, 1
    %v732 = vmax.f32 %v730, %v731
    %v733 = vsel %vm508, %v695, -inf
    %v734 = vrot.slane %v733, 4
    %v735 = vmax.f32 %v733, %v734
    %v736 = vrot.slane %v735, 2
    %v737 = vmax.f32 %v735, %v736
    %v738 = vrot.slane %v737, 1
    %v739 = vmax.f32 %v737, %v738
    %v740 = vsel %vm508, %v696, -inf
    %v741 = vrot.slane %v740, 4
    %v742 = vmax.f32 %v740, %v741
    %v743 = vrot.slane %v742, 2
    %v744 = vmax.f32 %v742, %v743
    %v745 = vrot.slane %v744, 1
    %v746 = vmax.f32 %v744, %v745
    %v747 = vsel %vm508, %v697, -inf
    %v748 = vrot.slane %v747, 4
    %v749 = vmax.f32 %v747, %v748
    %v750 = vrot.slane %v749, 2
    %v751 = vmax.f32 %v749, %v750
    %v752 = vrot.slane %v751, 1
    %v753 = vmax.f32 %v751, %v752
    %v754 = vpack.c.bf16 %v643, %v642
    %v755 = vpack.c.bf16 %v645, %v644
    %v756 = vpack.c.bf16 %v647, %v646
    %v757 = vpack.c.bf16 %v649, %v648
    %v758 = vld [vmem:[#allocation6] sm:$0xf]
    %v759 = vld [vmem:[#allocation6 + $0x4] sm:$0xf]
    %v762 = vunpack.c.l.b16 %v758
    %v763 = vunpack.c.l.b16 %v759
    %v764 = vpack.c.b16 %v763, %v762
    %v767 = vsel %vm508, %v754, 0
    %v770 = vsel %vm508, %v755, 0
    %v773 = vsel %vm508, %v756, 0
    %v776 = vsel %vm508, %v757, 0
    %778 = vmatprep.subr.bf16.mxu0 0
    %779 = vmatpush1.bf16.msra.mxu0 0
    %780 = vmatprep.subr.bf16.mxu0 0
    %781 = vmatpush1.bf16.msra.mxu0 0
    %782 = vmatprep.subr.bf16.mxu0 0
    %783 = vmatpush1.bf16.msra.mxu0 0
    %784 = vmatprep.subr.bf16.mxu0 0
    %785 = vmatpush1.bf16.msra.mxu0 0
    %786 = vmatprep.subr.bf16.mxu0 0
    %787 = vmatpush1.bf16.msra.mxu0 0
    %788 = vmatprep.subr.bf16.mxu0 0
    %789 = vmatpush1.bf16.msra.mxu0 0
    %790 = vmatprep.subr.bf16.mxu0 0
    %791 = vmatpush1.bf16.msra.mxu0 0
    %792 = vmatprep.subr.bf16.mxu0 0
    %793 = vmatpush1.bf16.msra.mxu0 %v764
    %794 = vmatprep.subr.bf16.mxu0 0
    %795 = vmatpush2.bf16.msra.mxu0 0
    %796 = vmatprep.subr.bf16.mxu0 0
    %797 = vmatpush2.bf16.msra.mxu0 0
    %798 = vmatprep.subr.bf16.mxu0 0
    %799 = vmatpush2.bf16.msra.mxu0 0
    %800 = vmatprep.subr.bf16.mxu0 0
    %801 = vmatpush2.bf16.msra.mxu0 0
    %802 = vmatprep.subr.bf16.mxu0 0
    %803 = vmatpush2.bf16.msra.mxu0 0
    %804 = vmatprep.subr.bf16.mxu0 0
    %805 = vmatpush2.bf16.msra.mxu0 0
    %806 = vmatprep.subr.bf16.mxu0 0
    %807 = vmatpush2.bf16.msra.mxu0 0
    %808 = vmatprep.subr.bf16.mxu0 0
    %809 = vmatpush2.bf16.msra.mxu0 0
    %810 = vmatprep.mubr.bf16.mxu0 0
    %811 = vmatmul.mubr.bf16.gmra.mxu0 %v767
    %v812 = vpop.f32.mrf.mxu0
    %v813 = vadd.f32 0.0, %v812
    %v814 = vpop.f32.mrf.mxu0
    %v815 = vpop.f32.mrf.mxu0
    %v816 = vadd.f32 0.0, %v815
    %v817 = vpop.f32.mrf.mxu0
    %818 = vmatprep.mubr.bf16.mxu0 0
    %819 = vmatmul.mubr.bf16.gmra.mxu0 %v770
    %v820 = vpop.f32.mrf.mxu0
    %v821 = vadd.f32 0.0, %v820
    %v822 = vpop.f32.mrf.mxu0
    %v823 = vpop.f32.mrf.mxu0
    %v824 = vadd.f32 0.0, %v823
    %v825 = vpop.f32.mrf.mxu0
    %826 = vmatprep.mubr.bf16.mxu0 0
    %827 = vmatmul.mubr.bf16.gmra.mxu0 %v773
    %v828 = vpop.f32.mrf.mxu0
    %v829 = vadd.f32 0.0, %v828
    %v830 = vpop.f32.mrf.mxu0
    %v831 = vpop.f32.mrf.mxu0
    %v832 = vadd.f32 0.0, %v831
    %v833 = vpop.f32.mrf.mxu0
    %834 = vmatprep.mubr.bf16.mxu0 0
    %835 = vmatmul.mubr.bf16.gmra.mxu0 %v776
    %v836 = vpop.f32.mrf.mxu0
    %v837 = vadd.f32 0.0, %v836
    %v838 = vpop.f32.mrf.mxu0
    %v839 = vpop.f32.mrf.mxu0
    %v840 = vadd.f32 0.0, %v839
    %v841 = vpop.f32.mrf.mxu0
    %842 = vdwg.mxu0
    %v843 = vpack.c.bf16 %v704, %v704
    %v844 = vpack.c.bf16 %v711, %v711
    %v845 = vpack.c.bf16 %v718, %v718
    %v846 = vpack.c.bf16 %v725, %v725
    %v847 = vpack.c.bf16 %v732, %v732
    %v848 = vpack.c.bf16 %v739, %v739
    %v849 = vpack.c.bf16 %v746, %v746
    %v850 = vpack.c.bf16 %v753, %v753
    %v851 = vld [vmem:[#allocation7] sm:$0xf]
    %v852 = vld [vmem:[#allocation7 + $0x4] sm:$0xf]
    %v853 = vld [vmem:[#allocation9] sm:$0x1]
    %v855 = vlaneseq
    %v856 = vshrl.u32 %v855, 7
    %v857 = vsub.s32 0, %v856
    %v858 = vrot.slane %v853, %v857
    %v868 = vunpack.c.l.b16 %v843
    %v869 = vunpack.c.l.b16 %v844
    %v870 = vunpack.c.l.b16 %v845
    %v871 = vunpack.c.l.b16 %v846
    %v872 = vunpack.c.l.b16 %v847
    %v873 = vunpack.c.l.b16 %v848
    %v874 = vunpack.c.l.b16 %v849
    %v875 = vunpack.c.l.b16 %v850
    %vm876 = vcmask 1041409
    %v877 = vsel %vm876, %v869, %v868
    %vm878 = vcmask 1042434
    %v879 = vsel %vm878, %v870, %v877
    %vm880 = vcmask 1043459
    %v881 = vsel %vm880, %v871, %v879
    %vm882 = vcmask 1044484
    %v883 = vsel %vm882, %v872, %v881
    %vm884 = vcmask 1045509
    %v885 = vsel %vm884, %v873, %v883
    %vm886 = vcmask 1046534
    %v887 = vsel %vm886, %v874, %v885
    %vm888 = vcmask 1047559
    %v889 = vsel %vm888, %v875, %v887
    %v890 = vpack.c.b16 %v889, %v889
    %v893 = vunpack.c.l.b16 %v851
    %v894 = vunpack.c.l.b16 %v852
    %v895 = vpack.c.b16 %v894, %v893
    %v898 = vsel %vm508, %v890, 0
    %900 = vmatprep.subr.bf16.mxu0 0
    %901 = vmatpush1.bf16.msra.mxu0 0
    %902 = vmatprep.subr.bf16.mxu0 0
    %903 = vmatpush1.bf16.msra.mxu0 0
    %904 = vmatprep.subr.bf16.mxu0 0
    %905 = vmatpush1.bf16.msra.mxu0 0
    %906 = vmatprep.subr.bf16.mxu0 0
    %907 = vmatpush1.bf16.msra.mxu0 0
    %908 = vmatprep.subr.bf16.mxu0 0
    %909 = vmatpush1.bf16.msra.mxu0 0
    %910 = vmatprep.subr.bf16.mxu0 0
    %911 = vmatpush1.bf16.msra.mxu0 0
    %912 = vmatprep.subr.bf16.mxu0 0
    %913 = vmatpush1.bf16.msra.mxu0 0
    %914 = vmatprep.subr.bf16.mxu0 0
    %915 = vmatpush1.bf16.msra.mxu0 %v895
    %916 = vmatprep.subr.bf16.mxu0 0
    %917 = vmatpush2.bf16.msra.mxu0 0
    %918 = vmatprep.subr.bf16.mxu0 0
    %919 = vmatpush2.bf16.msra.mxu0 0
    %920 = vmatprep.subr.bf16.mxu0 0
    %921 = vmatpush2.bf16.msra.mxu0 0
    %922 = vmatprep.subr.bf16.mxu0 0
    %923 = vmatpush2.bf16.msra.mxu0 0
    %924 = vmatprep.subr.bf16.mxu0 0
    %925 = vmatpush2.bf16.msra.mxu0 0
    %926 = vmatprep.subr.bf16.mxu0 0
    %927 = vmatpush2.bf16.msra.mxu0 0
    %928 = vmatprep.subr.bf16.mxu0 0
    %929 = vmatpush2.bf16.msra.mxu0 0
    %930 = vmatprep.subr.bf16.mxu0 0
    %931 = vmatpush2.bf16.msra.mxu0 0
    %932 = vmatprep.mubr.bf16.mxu0 0
    %933 = vmatmul.mubr.bf16.gmra.mxu0 %v898
    %v934 = vpop.f32.mrf.mxu0
    %v935 = vadd.f32 %v858, %v934
    %v936 = vpop.f32.mrf.mxu0
    %v937 = vpop.f32.mrf.mxu0
    %v938 = vpop.f32.mrf.mxu0
    %939 = vdwg.mxu0
    %v941 = vcombine.high %v935, %v935
    %v943 = vunpack.c.l.s4 1966171168
    %v944 = vunpack.c.0.s8 %v943
    %v945 = vlaneseq
    %v946 = vshrl.u32 %v945, 7
    %v947 = vsub.s32 %v944, %v946
    %v948 = vrot.slane %v935, %v947
    %v950 = vunpack.c.l.s4 1966171168
    %v951 = vunpack.c.0.s8 %v950
    %v952 = vlaneseq
    %v953 = vshrl.u32 %v952, 7
    %v954 = vsub.s32 %v951, %v953
    %v955 = vrot.slane %v941, %v954
    %v956 = vcombine.high %v948, %v948
    %v957 = vcombine.high %v955, %v955
    %v959 = vunpack.c.l.s4 1966171168
    %v960 = vunpack.c.0.s8 %v959
    %v961 = vlaneseq
    %v962 = vshrl.u32 %v961, 7
    %v963 = vsub.s32 %v960, %v962
    %v964 = vrot.slane %v948, %v963
    %v966 = vunpack.c.l.s4 1966171168
    %v967 = vunpack.c.0.s8 %v966
    %v968 = vlaneseq
    %v969 = vshrl.u32 %v968, 7
    %v970 = vsub.s32 %v967, %v969
    %v971 = vrot.slane %v955, %v970
    %v973 = vunpack.c.l.s4 1966171168
    %v974 = vunpack.c.0.s8 %v973
    %v975 = vlaneseq
    %v976 = vshrl.u32 %v975, 7
    %v977 = vsub.s32 %v974, %v976
    %v978 = vrot.slane %v956, %v977
    %v980 = vunpack.c.l.s4 1966171168
    %v981 = vunpack.c.0.s8 %v980
    %v982 = vlaneseq
    %v983 = vshrl.u32 %v982, 7
    %v984 = vsub.s32 %v981, %v983
    %v985 = vrot.slane %v957, %v984
    %v986 = vcombine.high %v964, %v964
    %v987 = vcombine.high %v971, %v971
    %v988 = vcombine.high %v978, %v978
    %v989 = vcombine.high %v985, %v985
    %v990 = vlaneseq
    %v991 = vshrl.u32 %v990, 7
    %v992 = vsub.s32 0, %v991
    %v993 = vrot.slane %v964, %v992
    %v994 = vlaneseq
    %v995 = vshrl.u32 %v994, 7
    %v996 = vsub.s32 0, %v995
    %v997 = vrot.slane %v978, %v996
    %v998 = vlaneseq
    %v999 = vshrl.u32 %v998, 7
    %v1000 = vsub.s32 0, %v999
    %v1001 = vrot.slane %v986, %v1000
    %v1002 = vlaneseq
    %v1003 = vshrl.u32 %v1002, 7
    %v1004 = vsub.s32 0, %v1003
    %v1005 = vrot.slane %v988, %v1004
    %v1006 = vlaneseq
    %v1007 = vshrl.u32 %v1006, 7
    %v1008 = vsub.s32 0, %v1007
    %v1009 = vrot.slane %v971, %v1008
    %v1010 = vlaneseq
    %v1011 = vshrl.u32 %v1010, 7
    %v1012 = vsub.s32 0, %v1011
    %v1013 = vrot.slane %v985, %v1012
    %v1014 = vlaneseq
    %v1015 = vshrl.u32 %v1014, 7
    %v1016 = vsub.s32 0, %v1015
    %v1017 = vrot.slane %v987, %v1016
    %v1018 = vlaneseq
    %v1019 = vshrl.u32 %v1018, 7
    %v1020 = vsub.s32 0, %v1019
    %v1021 = vrot.slane %v989, %v1020
    %v1030 = vadd.f32 %v813, %v993
    %v1031 = vadd.f32 %v816, %v997
    %v1032 = vadd.f32 %v821, %v1001
    %v1033 = vadd.f32 %v824, %v1005
    %v1034 = vadd.f32 %v829, %v1009
    %v1035 = vadd.f32 %v832, %v1013
    %v1036 = vadd.f32 %v837, %v1017
    %v1037 = vadd.f32 %v840, %v1021
    %v1038 = vld [vmem:[#allocation10] sm:$0x1]
    %v1039 = vld [vmem:[#allocation12] sm:$0x1]
    %v1040 = vsel %vm508, %v1030, 0.0
    %1041 = vadd.xlane.f32.xlu0 %v1040
    %v1042 = vpop.xlane.xlu0 %1041
    %v1043 = vsel %vm508, %v1031, 0.0
    %1044 = vadd.xlane.f32.xlu0 %v1043
    %v1045 = vpop.xlane.xlu0 %1044
    %v1046 = vsel %vm508, %v1032, 0.0
    %1047 = vadd.xlane.f32.xlu0 %v1046
    %v1048 = vpop.xlane.xlu0 %1047
    %v1049 = vsel %vm508, %v1033, 0.0
    %1050 = vadd.xlane.f32.xlu0 %v1049
    %v1051 = vpop.xlane.xlu0 %1050
    %v1052 = vsel %vm508, %v1034, 0.0
    %1053 = vadd.xlane.f32.xlu0 %v1052
    %v1054 = vpop.xlane.xlu0 %1053
    %v1055 = vsel %vm508, %v1035, 0.0
    %1056 = vadd.xlane.f32.xlu0 %v1055
    %v1057 = vpop.xlane.xlu0 %1056
    %v1058 = vsel %vm508, %v1036, 0.0
    %1059 = vadd.xlane.f32.xlu0 %v1058
    %v1060 = vpop.xlane.xlu0 %1059
    %v1061 = vsel %vm508, %v1037, 0.0
    %1062 = vadd.xlane.f32.xlu0 %v1061
    %v1063 = vpop.xlane.xlu0 %1062
    %v1064 = vmul.f32 %v1042, %v533
    %v1065 = vmul.f32 %v1045, %v533
    %v1066 = vmul.f32 %v1048, %v533
    %v1067 = vmul.f32 %v1051, %v533
    %v1068 = vmul.f32 %v1054, %v533
    %v1069 = vmul.f32 %v1057, %v533
    %v1070 = vmul.f32 %v1060, %v533
    %v1071 = vmul.f32 %v1063, %v533
    %v1072 = vsub.f32 %v1030, %v1064
    %v1073 = vsub.f32 %v1031, %v1065
    %v1074 = vsub.f32 %v1032, %v1066
    %v1075 = vsub.f32 %v1033, %v1067
    %v1076 = vsub.f32 %v1034, %v1068
    %v1077 = vsub.f32 %v1035, %v1069
    %v1078 = vsub.f32 %v1036, %v1070
    %v1079 = vsub.f32 %v1037, %v1071
    %v1080 = vmul.f32 %v1072, %v1072
    %v1081 = vmul.f32 %v1073, %v1073
    %v1082 = vmul.f32 %v1074, %v1074
    %v1083 = vmul.f32 %v1075, %v1075
    %v1084 = vmul.f32 %v1076, %v1076
    %v1085 = vmul.f32 %v1077, %v1077
    %v1086 = vmul.f32 %v1078, %v1078
    %v1087 = vmul.f32 %v1079, %v1079
    %v1088 = vsel %vm508, %v1080, 0.0
    %1089 = vadd.xlane.f32.xlu0 %v1088
    %v1090 = vpop.xlane.xlu0 %1089
    %v1091 = vsel %vm508, %v1081, 0.0
    %1092 = vadd.xlane.f32.xlu0 %v1091
    %v1093 = vpop.xlane.xlu0 %1092
    %v1094 = vsel %vm508, %v1082, 0.0
    %1095 = vadd.xlane.f32.xlu0 %v1094
    %v1096 = vpop.xlane.xlu0 %1095
    %v1097 = vsel %vm508, %v1083, 0.0
    %1098 = vadd.xlane.f32.xlu0 %v1097
    %v1099 = vpop.xlane.xlu0 %1098
    %v1100 = vsel %vm508, %v1084, 0.0
    %1101 = vadd.xlane.f32.xlu0 %v1100
    %v1102 = vpop.xlane.xlu0 %1101
    %v1103 = vsel %vm508, %v1085, 0.0
    %1104 = vadd.xlane.f32.xlu0 %v1103
    %v1105 = vpop.xlane.xlu0 %1104
    %v1106 = vsel %vm508, %v1086, 0.0
    %1107 = vadd.xlane.f32.xlu0 %v1106
    %v1108 = vpop.xlane.xlu0 %1107
    %v1109 = vsel %vm508, %v1087, 0.0
    %1110 = vadd.xlane.f32.xlu0 %v1109
    %v1111 = vpop.xlane.xlu0 %1110
    %v1112 = vmul.f32 %v1090, %v533
    %v1113 = vmul.f32 %v1093, %v533
    %v1114 = vmul.f32 %v1096, %v533
    %v1115 = vmul.f32 %v1099, %v533
    %v1116 = vmul.f32 %v1102, %v533
    %v1117 = vmul.f32 %v1105, %v533
    %v1118 = vmul.f32 %v1108, %v533
    %v1119 = vmul.f32 %v1111, %v533
    %v1120 = vadd.f32 %v1112, 1e-05
    %v1121 = vadd.f32 %v1113, 1e-05
    %v1122 = vadd.f32 %v1114, 1e-05
    %v1123 = vadd.f32 %v1115, 1e-05
    %v1124 = vadd.f32 %v1116, 1e-05
    %v1125 = vadd.f32 %v1117, 1e-05
    %v1126 = vadd.f32 %v1118, 1e-05
    %v1127 = vadd.f32 %v1119, 1e-05
    %v1128 = vrsqrt.pop %v1120
    %v1129 = vrsqrt.pop %v1121
    %v1130 = vrsqrt.pop %v1122
    %v1131 = vrsqrt.pop %v1123
    %v1132 = vrsqrt.pop %v1124
    %v1133 = vrsqrt.pop %v1125
    %v1134 = vrsqrt.pop %v1126
    %v1135 = vrsqrt.pop %v1127
    %v1136 = vmul.f32 %v1072, %v1128
    %v1137 = vmul.f32 %v1073, %v1129
    %v1138 = vmul.f32 %v1074, %v1130
    %v1139 = vmul.f32 %v1075, %v1131
    %v1140 = vmul.f32 %v1076, %v1132
    %v1141 = vmul.f32 %v1077, %v1133
    %v1142 = vmul.f32 %v1078, %v1134
    %v1143 = vmul.f32 %v1079, %v1135
    %v1145 = vlaneseq
    %v1146 = vshrl.u32 %v1145, 7
    %v1147 = vsub.s32 0, %v1146
    %v1148 = vrot.slane %v1038, %v1147
    %v1150 = vmul.f32 %v1136, %v1148
    %v1151 = vmul.f32 %v1137, %v1148
    %v1152 = vmul.f32 %v1138, %v1148
    %v1153 = vmul.f32 %v1139, %v1148
    %v1154 = vmul.f32 %v1140, %v1148
    %v1155 = vmul.f32 %v1141, %v1148
    %v1156 = vmul.f32 %v1142, %v1148
    %v1157 = vmul.f32 %v1143, %v1148
    %v1159 = vlaneseq
    %v1160 = vshrl.u32 %v1159, 7
    %v1161 = vsub.s32 0, %v1160
    %v1162 = vrot.slane %v1039, %v1161
    %v1164 = vadd.f32 %v1150, %v1162
    %v1165 = vadd.f32 %v1151, %v1162
    %v1166 = vadd.f32 %v1152, %v1162
    %v1167 = vadd.f32 %v1153, %v1162
    %v1168 = vadd.f32 %v1154, %v1162
    %v1169 = vadd.f32 %v1155, %v1162
    %v1170 = vadd.f32 %v1156, %v1162
    %v1171 = vadd.f32 %v1157, %v1162
    %v1172 = vmax.f32 %v1164, 0.0
    %v1173 = vmax.f32 %v1165, 0.0
    %v1174 = vmax.f32 %v1166, 0.0
    %v1175 = vmax.f32 %v1167, 0.0
    %v1176 = vmax.f32 %v1168, 0.0
    %v1177 = vmax.f32 %v1169, 0.0
    %v1178 = vmax.f32 %v1170, 0.0
    %v1179 = vmax.f32 %v1171, 0.0
    %v1180 = vsel %vm682, %v1172, 0.0
    %v1181 = vsel %vm683, %v1173, 0.0
    %v1182 = vsel %vm684, %v1174, 0.0
    %v1183 = vsel %vm685, %v1175, 0.0
    %v1184 = vsel %vm686, %v1176, 0.0
    %v1185 = vsel %vm687, %v1177, 0.0
    %v1186 = vsel %vm688, %v1178, 0.0
    %v1187 = vsel %vm689, %v1179, 0.0
    %v1188 = vsel %vm508, %v1180, -inf
    %v1189 = vrot.slane %v1188, 4
    %v1190 = vmax.f32 %v1188, %v1189
    %v1191 = vrot.slane %v1190, 2
    %v1192 = vmax.f32 %v1190, %v1191
    %v1193 = vrot.slane %v1192, 1
    %v1194 = vmax.f32 %v1192, %v1193
    %v1195 = vsel %vm508, %v1181, -inf
    %v1196 = vrot.slane %v1195, 4
    %v1197 = vmax.f32 %v1195, %v1196
    %v1198 = vrot.slane %v1197, 2
    %v1199 = vmax.f32 %v1197, %v1198
    %v1200 = vrot.slane %v1199, 1
    %v1201 = vmax.f32 %v1199, %v1200
    %v1202 = vsel %vm508, %v1182, -inf
    %v1203 = vrot.slane %v1202, 4
    %v1204 = vmax.f32 %v1202, %v1203
    %v1205 = vrot.slane %v1204, 2
    %v1206 = vmax.f32 %v1204, %v1205
    %v1207 = vrot.slane %v1206, 1
    %v1208 = vmax.f32 %v1206, %v1207
    %v1209 = vsel %vm508, %v1183, -inf
    %v1210 = vrot.slane %v1209, 4
    %v1211 = vmax.f32 %v1209, %v1210
    %v1212 = vrot.slane %v1211, 2
    %v1213 = vmax.f32 %v1211, %v1212
    %v1214 = vrot.slane %v1213, 1
    %v1215 = vmax.f32 %v1213, %v1214
    %v1216 = vsel %vm508, %v1184, -inf
    %v1217 = vrot.slane %v1216, 4
    %v1218 = vmax.f32 %v1216, %v1217
    %v1219 = vrot.slane %v1218, 2
    %v1220 = vmax.f32 %v1218, %v1219
    %v1221 = vrot.slane %v1220, 1
    %v1222 = vmax.f32 %v1220, %v1221
    %v1223 = vsel %vm508, %v1185, -inf
    %v1224 = vrot.slane %v1223, 4
    %v1225 = vmax.f32 %v1223, %v1224
    %v1226 = vrot.slane %v1225, 2
    %v1227 = vmax.f32 %v1225, %v1226
    %v1228 = vrot.slane %v1227, 1
    %v1229 = vmax.f32 %v1227, %v1228
    %v1230 = vsel %vm508, %v1186, -inf
    %v1231 = vrot.slane %v1230, 4
    %v1232 = vmax.f32 %v1230, %v1231
    %v1233 = vrot.slane %v1232, 2
    %v1234 = vmax.f32 %v1232, %v1233
    %v1235 = vrot.slane %v1234, 1
    %v1236 = vmax.f32 %v1234, %v1235
    %v1237 = vsel %vm508, %v1187, -inf
    %v1238 = vrot.slane %v1237, 4
    %v1239 = vmax.f32 %v1237, %v1238
    %v1240 = vrot.slane %v1239, 2
    %v1241 = vmax.f32 %v1239, %v1240
    %v1242 = vrot.slane %v1241, 1
    %v1243 = vmax.f32 %v1241, %v1242
    %v1244 = vpack.c.bf16 %v1173, %v1172
    %v1245 = vpack.c.bf16 %v1175, %v1174
    %v1246 = vpack.c.bf16 %v1177, %v1176
    %v1247 = vpack.c.bf16 %v1179, %v1178
    %v1248 = vld [vmem:[#allocation13] sm:$0xf]
    %v1249 = vld [vmem:[#allocation13 + $0x4] sm:$0xf]
    %v1252 = vunpack.c.l.b16 %v1248
    %v1253 = vunpack.c.l.b16 %v1249
    %v1254 = vpack.c.b16 %v1253, %v1252
    %v1257 = vsel %vm508, %v1244, 0
    %v1260 = vsel %vm508, %v1245, 0
    %v1263 = vsel %vm508, %v1246, 0
    %v1266 = vsel %vm508, %v1247, 0
    %1268 = vmatprep.subr.bf16.mxu0 0
    %1269 = vmatpush1.bf16.msra.mxu0 0
    %1270 = vmatprep.subr.bf16.mxu0 0
    %1271 = vmatpush1.bf16.msra.mxu0 0
    %1272 = vmatprep.subr.bf16.mxu0 0
    %1273 = vmatpush1.bf16.msra.mxu0 0
    %1274 = vmatprep.subr.bf16.mxu0 0
    %1275 = vmatpush1.bf16.msra.mxu0 0
    %1276 = vmatprep.subr.bf16.mxu0 0
    %1277 = vmatpush1.bf16.msra.mxu0 0
    %1278 = vmatprep.subr.bf16.mxu0 0
    %1279 = vmatpush1.bf16.msra.mxu0 0
    %1280 = vmatprep.subr.bf16.mxu0 0
    %1281 = vmatpush1.bf16.msra.mxu0 0
    %1282 = vmatprep.subr.bf16.mxu0 0
    %1283 = vmatpush1.bf16.msra.mxu0 %v1254
    %1284 = vmatprep.subr.bf16.mxu0 0
    %1285 = vmatpush2.bf16.msra.mxu0 0
    %1286 = vmatprep.subr.bf16.mxu0 0
    %1287 = vmatpush2.bf16.msra.mxu0 0
    %1288 = vmatprep.subr.bf16.mxu0 0
    %1289 = vmatpush2.bf16.msra.mxu0 0
    %1290 = vmatprep.subr.bf16.mxu0 0
    %1291 = vmatpush2.bf16.msra.mxu0 0
    %1292 = vmatprep.subr.bf16.mxu0 0
    %1293 = vmatpush2.bf16.msra.mxu0 0
    %1294 = vmatprep.subr.bf16.mxu0 0
    %1295 = vmatpush2.bf16.msra.mxu0 0
    %1296 = vmatprep.subr.bf16.mxu0 0
    %1297 = vmatpush2.bf16.msra.mxu0 0
    %1298 = vmatprep.subr.bf16.mxu0 0
    %1299 = vmatpush2.bf16.msra.mxu0 0
    %1300 = vmatprep.mubr.bf16.mxu0 0
    %1301 = vmatmul.mubr.bf16.gmra.mxu0 %v1257
    %v1302 = vpop.f32.mrf.mxu0
    %v1303 = vadd.f32 0.0, %v1302
    %v1304 = vpop.f32.mrf.mxu0
    %v1305 = vpop.f32.mrf.mxu0
    %v1306 = vadd.f32 0.0, %v1305
    %v1307 = vpop.f32.mrf.mxu0
    %1308 = vmatprep.mubr.bf16.mxu0 0
    %1309 = vmatmul.mubr.bf16.gmra.mxu0 %v1260
    %v1310 = vpop.f32.mrf.mxu0
    %v1311 = vadd.f32 0.0, %v1310
    %v1312 = vpop.f32.mrf.mxu0
    %v1313 = vpop.f32.mrf.mxu0
    %v1314 = vadd.f32 0.0, %v1313
    %v1315 = vpop.f32.mrf.mxu0
    %1316 = vmatprep.mubr.bf16.mxu0 0
    %1317 = vmatmul.mubr.bf16.gmra.mxu0 %v1263
    %v1318 = vpop.f32.mrf.mxu0
    %v1319 = vadd.f32 0.0, %v1318
    %v1320 = vpop.f32.mrf.mxu0
    %v1321 = vpop.f32.mrf.mxu0
    %v1322 = vadd.f32 0.0, %v1321
    %v1323 = vpop.f32.mrf.mxu0
    %1324 = vmatprep.mubr.bf16.mxu0 0
    %1325 = vmatmul.mubr.bf16.gmra.mxu0 %v1266
    %v1326 = vpop.f32.mrf.mxu0
    %v1327 = vadd.f32 0.0, %v1326
    %v1328 = vpop.f32.mrf.mxu0
    %v1329 = vpop.f32.mrf.mxu0
    %v1330 = vadd.f32 0.0, %v1329
    %v1331 = vpop.f32.mrf.mxu0
    %1332 = vdwg.mxu0
    %v1333 = vpack.c.bf16 %v1194, %v1194
    %v1334 = vpack.c.bf16 %v1201, %v1201
    %v1335 = vpack.c.bf16 %v1208, %v1208
    %v1336 = vpack.c.bf16 %v1215, %v1215
    %v1337 = vpack.c.bf16 %v1222, %v1222
    %v1338 = vpack.c.bf16 %v1229, %v1229
    %v1339 = vpack.c.bf16 %v1236, %v1236
    %v1340 = vpack.c.bf16 %v1243, %v1243
    %v1341 = vld [vmem:[#allocation15] sm:$0xf]
    %v1342 = vld [vmem:[#allocation15 + $0x4] sm:$0xf]
    %v1343 = vld [vmem:[#allocation16] sm:$0x1]
    %v1345 = vlaneseq
    %v1346 = vshrl.u32 %v1345, 7
    %v1347 = vsub.s32 0, %v1346
    %v1348 = vrot.slane %v1343, %v1347
    %v1358 = vunpack.c.l.b16 %v1333
    %v1359 = vunpack.c.l.b16 %v1334
    %v1360 = vunpack.c.l.b16 %v1335
    %v1361 = vunpack.c.l.b16 %v1336
    %v1362 = vunpack.c.l.b16 %v1337
    %v1363 = vunpack.c.l.b16 %v1338
    %v1364 = vunpack.c.l.b16 %v1339
    %v1365 = vunpack.c.l.b16 %v1340
    %v1366 = vsel %vm876, %v1359, %v1358
    %v1367 = vsel %vm878, %v1360, %v1366
    %v1368 = vsel %vm880, %v1361, %v1367
    %v1369 = vsel %vm882, %v1362, %v1368
    %v1370 = vsel %vm884, %v1363, %v1369
    %v1371 = vsel %vm886, %v1364, %v1370
    %v1372 = vsel %vm888, %v1365, %v1371
    %v1373 = vpack.c.b16 %v1372, %v1372
    %v1376 = vunpack.c.l.b16 %v1341
    %v1377 = vunpack.c.l.b16 %v1342
    %v1378 = vpack.c.b16 %v1377, %v1376
    %v1381 = vsel %vm508, %v1373, 0
    %1383 = vmatprep.subr.bf16.mxu0 0
    %1384 = vmatpush1.bf16.msra.mxu0 0
    %1385 = vmatprep.subr.bf16.mxu0 0
    %1386 = vmatpush1.bf16.msra.mxu0 0
    %1387 = vmatprep.subr.bf16.mxu0 0
    %1388 = vmatpush1.bf16.msra.mxu0 0
    %1389 = vmatprep.subr.bf16.mxu0 0
    %1390 = vmatpush1.bf16.msra.mxu0 0
    %1391 = vmatprep.subr.bf16.mxu0 0
    %1392 = vmatpush1.bf16.msra.mxu0 0
    %1393 = vmatprep.subr.bf16.mxu0 0
    %1394 = vmatpush1.bf16.msra.mxu0 0
    %1395 = vmatprep.subr.bf16.mxu0 0
    %1396 = vmatpush1.bf16.msra.mxu0 0
    %1397 = vmatprep.subr.bf16.mxu0 0
    %1398 = vmatpush1.bf16.msra.mxu0 %v1378
    %1399 = vmatprep.subr.bf16.mxu0 0
    %1400 = vmatpush2.bf16.msra.mxu0 0
    %1401 = vmatprep.subr.bf16.mxu0 0
    %1402 = vmatpush2.bf16.msra.mxu0 0
    %1403 = vmatprep.subr.bf16.mxu0 0
    %1404 = vmatpush2.bf16.msra.mxu0 0
    %1405 = vmatprep.subr.bf16.mxu0 0
    %1406 = vmatpush2.bf16.msra.mxu0 0
    %1407 = vmatprep.subr.bf16.mxu0 0
    %1408 = vmatpush2.bf16.msra.mxu0 0
    %1409 = vmatprep.subr.bf16.mxu0 0
    %1410 = vmatpush2.bf16.msra.mxu0 0
    %1411 = vmatprep.subr.bf16.mxu0 0
    %1412 = vmatpush2.bf16.msra.mxu0 0
    %1413 = vmatprep.subr.bf16.mxu0 0
    %1414 = vmatpush2.bf16.msra.mxu0 0
    %1415 = vmatprep.mubr.bf16.mxu0 0
    %1416 = vmatmul.mubr.bf16.gmra.mxu0 %v1381
    %v1417 = vpop.f32.mrf.mxu0
    %v1418 = vadd.f32 %v1348, %v1417
    %v1419 = vpop.f32.mrf.mxu0
    %v1420 = vpop.f32.mrf.mxu0
    %v1421 = vpop.f32.mrf.mxu0
    %1422 = vdwg.mxu0
    %v1424 = vcombine.high %v1418, %v1418
    %v1426 = vunpack.c.l.s4 1966171168
    %v1427 = vunpack.c.0.s8 %v1426
    %v1428 = vlaneseq
    %v1429 = vshrl.u32 %v1428, 7
    %v1430 = vsub.s32 %v1427, %v1429
    %v1431 = vrot.slane %v1418, %v1430
    %v1433 = vunpack.c.l.s4 1966171168
    %v1434 = vunpack.c.0.s8 %v1433
    %v1435 = vlaneseq
    %v1436 = vshrl.u32 %v1435, 7
    %v1437 = vsub.s32 %v1434, %v1436
    %v1438 = vrot.slane %v1424, %v1437
    %v1439 = vcombine.high %v1431, %v1431
    %v1440 = vcombine.high %v1438, %v1438
    %v1442 = vunpack.c.l.s4 1966171168
    %v1443 = vunpack.c.0.s8 %v1442
    %v1444 = vlaneseq
    %v1445 = vshrl.u32 %v1444, 7
    %v1446 = vsub.s32 %v1443, %v1445
    %v1447 = vrot.slane %v1431, %v1446
    %v1449 = vunpack.c.l.s4 1966171168
    %v1450 = vunpack.c.0.s8 %v1449
    %v1451 = vlaneseq
    %v1452 = vshrl.u32 %v1451, 7
    %v1453 = vsub.s32 %v1450, %v1452
    %v1454 = vrot.slane %v1438, %v1453
    %v1456 = vunpack.c.l.s4 1966171168
    %v1457 = vunpack.c.0.s8 %v1456
    %v1458 = vlaneseq
    %v1459 = vshrl.u32 %v1458, 7
    %v1460 = vsub.s32 %v1457, %v1459
    %v1461 = vrot.slane %v1439, %v1460
    %v1463 = vunpack.c.l.s4 1966171168
    %v1464 = vunpack.c.0.s8 %v1463
    %v1465 = vlaneseq
    %v1466 = vshrl.u32 %v1465, 7
    %v1467 = vsub.s32 %v1464, %v1466
    %v1468 = vrot.slane %v1440, %v1467
    %v1469 = vcombine.high %v1447, %v1447
    %v1470 = vcombine.high %v1454, %v1454
    %v1471 = vcombine.high %v1461, %v1461
    %v1472 = vcombine.high %v1468, %v1468
    %v1473 = vlaneseq
    %v1474 = vshrl.u32 %v1473, 7
    %v1475 = vsub.s32 0, %v1474
    %v1476 = vrot.slane %v1447, %v1475
    %v1477 = vlaneseq
    %v1478 = vshrl.u32 %v1477, 7
    %v1479 = vsub.s32 0, %v1478
    %v1480 = vrot.slane %v1461, %v1479
    %v1481 = vlaneseq
    %v1482 = vshrl.u32 %v1481, 7
    %v1483 = vsub.s32 0, %v1482
    %v1484 = vrot.slane %v1469, %v1483
    %v1485 = vlaneseq
    %v1486 = vshrl.u32 %v1485, 7
    %v1487 = vsub.s32 0, %v1486
    %v1488 = vrot.slane %v1471, %v1487
    %v1489 = vlaneseq
    %v1490 = vshrl.u32 %v1489, 7
    %v1491 = vsub.s32 0, %v1490
    %v1492 = vrot.slane %v1454, %v1491
    %v1493 = vlaneseq
    %v1494 = vshrl.u32 %v1493, 7
    %v1495 = vsub.s32 0, %v1494
    %v1496 = vrot.slane %v1468, %v1495
    %v1497 = vlaneseq
    %v1498 = vshrl.u32 %v1497, 7
    %v1499 = vsub.s32 0, %v1498
    %v1500 = vrot.slane %v1470, %v1499
    %v1501 = vlaneseq
    %v1502 = vshrl.u32 %v1501, 7
    %v1503 = vsub.s32 0, %v1502
    %v1504 = vrot.slane %v1472, %v1503
    %v1513 = vadd.f32 %v1303, %v1476
    %v1514 = vadd.f32 %v1306, %v1480
    %v1515 = vadd.f32 %v1311, %v1484
    %v1516 = vadd.f32 %v1314, %v1488
    %v1517 = vadd.f32 %v1319, %v1492
    %v1518 = vadd.f32 %v1322, %v1496
    %v1519 = vadd.f32 %v1327, %v1500
    %v1520 = vadd.f32 %v1330, %v1504
    %v1521 = vld [vmem:[#allocation18] sm:$0x1]
    %v1522 = vld [vmem:[#allocation19] sm:$0x1]
    %v1523 = vsel %vm508, %v1513, 0.0
    %1524 = vadd.xlane.f32.xlu0 %v1523
    %v1525 = vpop.xlane.xlu0 %1524
    %v1526 = vsel %vm508, %v1514, 0.0
    %1527 = vadd.xlane.f32.xlu0 %v1526
    %v1528 = vpop.xlane.xlu0 %1527
    %v1529 = vsel %vm508, %v1515, 0.0
    %1530 = vadd.xlane.f32.xlu0 %v1529
    %v1531 = vpop.xlane.xlu0 %1530
    %v1532 = vsel %vm508, %v1516, 0.0
    %1533 = vadd.xlane.f32.xlu0 %v1532
    %v1534 = vpop.xlane.xlu0 %1533
    %v1535 = vsel %vm508, %v1517, 0.0
    %1536 = vadd.xlane.f32.xlu0 %v1535
    %v1537 = vpop.xlane.xlu0 %1536
    %v1538 = vsel %vm508, %v1518, 0.0
    %1539 = vadd.xlane.f32.xlu0 %v1538
    %v1540 = vpop.xlane.xlu0 %1539
    %v1541 = vsel %vm508, %v1519, 0.0
    %1542 = vadd.xlane.f32.xlu0 %v1541
    %v1543 = vpop.xlane.xlu0 %1542
    %v1544 = vsel %vm508, %v1520, 0.0
    %1545 = vadd.xlane.f32.xlu0 %v1544
    %v1546 = vpop.xlane.xlu0 %1545
    %v1547 = vmul.f32 %v1525, %v533
    %v1548 = vmul.f32 %v1528, %v533
    %v1549 = vmul.f32 %v1531, %v533
    %v1550 = vmul.f32 %v1534, %v533
    %v1551 = vmul.f32 %v1537, %v533
    %v1552 = vmul.f32 %v1540, %v533
    %v1553 = vmul.f32 %v1543, %v533
    %v1554 = vmul.f32 %v1546, %v533
    %v1555 = vsub.f32 %v1513, %v1547
    %v1556 = vsub.f32 %v1514, %v1548
    %v1557 = vsub.f32 %v1515, %v1549
    %v1558 = vsub.f32 %v1516, %v1550
    %v1559 = vsub.f32 %v1517, %v1551
    %v1560 = vsub.f32 %v1518, %v1552
    %v1561 = vsub.f32 %v1519, %v1553
    %v1562 = vsub.f32 %v1520, %v1554
    %v1563 = vmul.f32 %v1555, %v1555
    %v1564 = vmul.f32 %v1556, %v1556
    %v1565 = vmul.f32 %v1557, %v1557
    %v1566 = vmul.f32 %v1558, %v1558
    %v1567 = vmul.f32 %v1559, %v1559
    %v1568 = vmul.f32 %v1560, %v1560
    %v1569 = vmul.f32 %v1561, %v1561
    %v1570 = vmul.f32 %v1562, %v1562
    %v1571 = vsel %vm508, %v1563, 0.0
    %1572 = vadd.xlane.f32.xlu0 %v1571
    %v1573 = vpop.xlane.xlu0 %1572
    %v1574 = vsel %vm508, %v1564, 0.0
    %1575 = vadd.xlane.f32.xlu0 %v1574
    %v1576 = vpop.xlane.xlu0 %1575
    %v1577 = vsel %vm508, %v1565, 0.0
    %1578 = vadd.xlane.f32.xlu0 %v1577
    %v1579 = vpop.xlane.xlu0 %1578
    %v1580 = vsel %vm508, %v1566, 0.0
    %1581 = vadd.xlane.f32.xlu0 %v1580
    %v1582 = vpop.xlane.xlu0 %1581
    %v1583 = vsel %vm508, %v1567, 0.0
    %1584 = vadd.xlane.f32.xlu0 %v1583
    %v1585 = vpop.xlane.xlu0 %1584
    %v1586 = vsel %vm508, %v1568, 0.0
    %1587 = vadd.xlane.f32.xlu0 %v1586
    %v1588 = vpop.xlane.xlu0 %1587
    %v1589 = vsel %vm508, %v1569, 0.0
    %1590 = vadd.xlane.f32.xlu0 %v1589
    %v1591 = vpop.xlane.xlu0 %1590
    %v1592 = vsel %vm508, %v1570, 0.0
    %1593 = vadd.xlane.f32.xlu0 %v1592
    %v1594 = vpop.xlane.xlu0 %1593
    %v1595 = vmul.f32 %v1573, %v533
    %v1596 = vmul.f32 %v1576, %v533
    %v1597 = vmul.f32 %v1579, %v533
    %v1598 = vmul.f32 %v1582, %v533
    %v1599 = vmul.f32 %v1585, %v533
    %v1600 = vmul.f32 %v1588, %v533
    %v1601 = vmul.f32 %v1591, %v533
    %v1602 = vmul.f32 %v1594, %v533
    %v1603 = vadd.f32 %v1595, 1e-05
    %v1604 = vadd.f32 %v1596, 1e-05
    %v1605 = vadd.f32 %v1597, 1e-05
    %v1606 = vadd.f32 %v1598, 1e-05
    %v1607 = vadd.f32 %v1599, 1e-05
    %v1608 = vadd.f32 %v1600, 1e-05
    %v1609 = vadd.f32 %v1601, 1e-05
    %v1610 = vadd.f32 %v1602, 1e-05
    %v1611 = vrsqrt.pop %v1603
    %v1612 = vrsqrt.pop %v1604
    %v1613 = vrsqrt.pop %v1605
    %v1614 = vrsqrt.pop %v1606
    %v1615 = vrsqrt.pop %v1607
    %v1616 = vrsqrt.pop %v1608
    %v1617 = vrsqrt.pop %v1609
    %v1618 = vrsqrt.pop %v1610
    %v1619 = vmul.f32 %v1555, %v1611
    %v1620 = vmul.f32 %v1556, %v1612
    %v1621 = vmul.f32 %v1557, %v1613
    %v1622 = vmul.f32 %v1558, %v1614
    %v1623 = vmul.f32 %v1559, %v1615
    %v1624 = vmul.f32 %v1560, %v1616
    %v1625 = vmul.f32 %v1561, %v1617
    %v1626 = vmul.f32 %v1562, %v1618
    %v1628 = vlaneseq
    %v1629 = vshrl.u32 %v1628, 7
    %v1630 = vsub.s32 0, %v1629
    %v1631 = vrot.slane %v1521, %v1630
    %v1633 = vmul.f32 %v1619, %v1631
    %v1634 = vmul.f32 %v1620, %v1631
    %v1635 = vmul.f32 %v1621, %v1631
    %v1636 = vmul.f32 %v1622, %v1631
    %v1637 = vmul.f32 %v1623, %v1631
    %v1638 = vmul.f32 %v1624, %v1631
    %v1639 = vmul.f32 %v1625, %v1631
    %v1640 = vmul.f32 %v1626, %v1631
    %v1642 = vlaneseq
    %v1643 = vshrl.u32 %v1642, 7
    %v1644 = vsub.s32 0, %v1643
    %v1645 = vrot.slane %v1522, %v1644
    %v1647 = vadd.f32 %v1633, %v1645
    %v1648 = vadd.f32 %v1634, %v1645
    %v1649 = vadd.f32 %v1635, %v1645
    %v1650 = vadd.f32 %v1636, %v1645
    %v1651 = vadd.f32 %v1637, %v1645
    %v1652 = vadd.f32 %v1638, %v1645
    %v1653 = vadd.f32 %v1639, %v1645
    %v1654 = vadd.f32 %v1640, %v1645
    %v1655 = vmax.f32 %v1647, 0.0
    %v1656 = vmax.f32 %v1648, 0.0
    %v1657 = vmax.f32 %v1649, 0.0
    %v1658 = vmax.f32 %v1650, 0.0
    %v1659 = vmax.f32 %v1651, 0.0
    %v1660 = vmax.f32 %v1652, 0.0
    %v1661 = vmax.f32 %v1653, 0.0
    %v1662 = vmax.f32 %v1654, 0.0
    %v1663 = vsel %vm682, %v1655, 0.0
    %v1664 = vsel %vm683, %v1656, 0.0
    %v1665 = vsel %vm684, %v1657, 0.0
    %v1666 = vsel %vm685, %v1658, 0.0
    %v1667 = vsel %vm686, %v1659, 0.0
    %v1668 = vsel %vm687, %v1660, 0.0
    %v1669 = vsel %vm688, %v1661, 0.0
    %v1670 = vsel %vm689, %v1662, 0.0
    %v1671 = vsel %vm508, %v1663, -inf
    %v1672 = vrot.slane %v1671, 4
    %v1673 = vmax.f32 %v1671, %v1672
    %v1674 = vrot.slane %v1673, 2
    %v1675 = vmax.f32 %v1673, %v1674
    %v1676 = vrot.slane %v1675, 1
    %v1677 = vmax.f32 %v1675, %v1676
    %v1678 = vsel %vm508, %v1664, -inf
    %v1679 = vrot.slane %v1678, 4
    %v1680 = vmax.f32 %v1678, %v1679
    %v1681 = vrot.slane %v1680, 2
    %v1682 = vmax.f32 %v1680, %v1681
    %v1683 = vrot.slane %v1682, 1
    %v1684 = vmax.f32 %v1682, %v1683
    %v1685 = vsel %vm508, %v1665, -inf
    %v1686 = vrot.slane %v1685, 4
    %v1687 = vmax.f32 %v1685, %v1686
    %v1688 = vrot.slane %v1687, 2
    %v1689 = vmax.f32 %v1687, %v1688
    %v1690 = vrot.slane %v1689, 1
    %v1691 = vmax.f32 %v1689, %v1690
    %v1692 = vsel %vm508, %v1666, -inf
    %v1693 = vrot.slane %v1692, 4
    %v1694 = vmax.f32 %v1692, %v1693
    %v1695 = vrot.slane %v1694, 2
    %v1696 = vmax.f32 %v1694, %v1695
    %v1697 = vrot.slane %v1696, 1
    %v1698 = vmax.f32 %v1696, %v1697
    %v1699 = vsel %vm508, %v1667, -inf
    %v1700 = vrot.slane %v1699, 4
    %v1701 = vmax.f32 %v1699, %v1700
    %v1702 = vrot.slane %v1701, 2
    %v1703 = vmax.f32 %v1701, %v1702
    %v1704 = vrot.slane %v1703, 1
    %v1705 = vmax.f32 %v1703, %v1704
    %v1706 = vsel %vm508, %v1668, -inf
    %v1707 = vrot.slane %v1706, 4
    %v1708 = vmax.f32 %v1706, %v1707
    %v1709 = vrot.slane %v1708, 2
    %v1710 = vmax.f32 %v1708, %v1709
    %v1711 = vrot.slane %v1710, 1
    %v1712 = vmax.f32 %v1710, %v1711
    %v1713 = vsel %vm508, %v1669, -inf
    %v1714 = vrot.slane %v1713, 4
    %v1715 = vmax.f32 %v1713, %v1714
    %v1716 = vrot.slane %v1715, 2
    %v1717 = vmax.f32 %v1715, %v1716
    %v1718 = vrot.slane %v1717, 1
    %v1719 = vmax.f32 %v1717, %v1718
    %v1720 = vsel %vm508, %v1670, -inf
    %v1721 = vrot.slane %v1720, 4
    %v1722 = vmax.f32 %v1720, %v1721
    %v1723 = vrot.slane %v1722, 2
    %v1724 = vmax.f32 %v1722, %v1723
    %v1725 = vrot.slane %v1724, 1
    %v1726 = vmax.f32 %v1724, %v1725
    %v1735 = vsel %vm876, %v1684, %v1677
    %v1736 = vsel %vm878, %v1691, %v1735
    %v1737 = vsel %vm880, %v1698, %v1736
    %v1738 = vsel %vm882, %v1705, %v1737
    %v1739 = vsel %vm884, %v1712, %v1738
    %v1740 = vsel %vm886, %v1719, %v1739
    %v1741 = vsel %vm888, %v1726, %v1740
    %1743 = vrot.lane.b32.xlu0 %v1741, 16
    %v1744 = vpop.permute.xlu0 %1743
    %v1746 = vsel %vm508, %v1741, %v1744
    %v1747 = vpack.c.bf16 %v1746, %v1746
    %v1750 = vunpack.c.l.s4 1983009808
    %v1751 = vunpack.c.0.s8 %v1750
    %v1752 = vlaneseq
    %v1753 = vshrl.u32 %v1752, 7
    %v1754 = vsub.s32 %v1751, %v1753
    %v1755 = vrot.slane %v1747, %v1754
    %v1756 = vcombine.high %v1755, %v1755
    %v1757 = vld [vmem:[%s16] sm:$0xf]
    %v1758 = vld [vmem:[%s16 + $0x4] sm:$0xf]
    %v1759 = vld [vmem:[%s16 + $0x8] sm:$0xf]
    %v1760 = vld [vmem:[%s16 + $0xc] sm:$0xf]
    %v1761 = vld [vmem:[#allocation21] sm:$0x1]
    %v1763 = vlaneseq
    %v1764 = vshrl.u32 %v1763, 7
    %v1765 = vsub.s32 0, %v1764
    %v1766 = vrot.slane %v1761, %v1765
    %v1769 = vunpack.c.l.s4 1983009808
    %v1770 = vunpack.c.0.s8 %v1769
    %v1771 = vlaneseq
    %v1772 = vshrl.u32 %v1771, 7
    %v1773 = vsub.s32 %v1770, %v1772
    %v1774 = vrot.slane %v1755, %v1773
    %v1776 = vunpack.c.l.s4 1983009808
    %v1777 = vunpack.c.0.s8 %v1776
    %v1778 = vlaneseq
    %v1779 = vshrl.u32 %v1778, 7
    %v1780 = vsub.s32 %v1777, %v1779
    %v1781 = vrot.slane %v1756, %v1780
    %v1782 = vunpack.c.l.b16 %v1774
    %v1783 = vunpack.c.l.b16 %v1781
    %v1784 = vrot.slane %v1783, 7
    %v1785 = vsel %vm876, %v1784, %v1782
    %v1786 = vpack.c.b16 %v1785, %v1785
    %v1791 = vunpack.c.l.b16 %v1757
    %v1792 = vunpack.c.l.b16 %v1758
    %v1793 = vunpack.c.l.b16 %v1759
    %v1794 = vunpack.c.l.b16 %v1760
    %v1795 = vpack.c.b16 %v1792, %v1791
    %v1796 = vpack.c.b16 %v1794, %v1793
    %v1800 = vsel %vm428, %v1786, 0
    %1802 = vmatprep.subr.bf16.mxu0 0
    %1803 = vmatpush1.bf16.msra.mxu0 0
    %1804 = vmatprep.subr.bf16.mxu0 0
    %1805 = vmatpush1.bf16.msra.mxu0 0
    %1806 = vmatprep.subr.bf16.mxu0 0
    %1807 = vmatpush1.bf16.msra.mxu0 0
    %1808 = vmatprep.subr.bf16.mxu0 0
    %1809 = vmatpush1.bf16.msra.mxu0 0
    %1810 = vmatprep.subr.bf16.mxu0 0
    %1811 = vmatpush1.bf16.msra.mxu0 0
    %1812 = vmatprep.subr.bf16.mxu0 0
    %1813 = vmatpush1.bf16.msra.mxu0 0
    %1814 = vmatprep.subr.bf16.mxu0 0
    %1815 = vmatpush1.bf16.msra.mxu0 %v1796
    %1816 = vmatprep.subr.bf16.mxu0 0
    %1817 = vmatpush1.bf16.msra.mxu0 %v1795
    %1818 = vmatprep.subr.bf16.mxu0 0
    %1819 = vmatpush2.bf16.msra.mxu0 0
    %1820 = vmatprep.subr.bf16.mxu0 0
    %1821 = vmatpush2.bf16.msra.mxu0 0
    %1822 = vmatprep.subr.bf16.mxu0 0
    %1823 = vmatpush2.bf16.msra.mxu0 0
    %1824 = vmatprep.subr.bf16.mxu0 0
    %1825 = vmatpush2.bf16.msra.mxu0 0
    %1826 = vmatprep.subr.bf16.mxu0 0
    %1827 = vmatpush2.bf16.msra.mxu0 0
    %1828 = vmatprep.subr.bf16.mxu0 0
    %1829 = vmatpush2.bf16.msra.mxu0 0
    %1830 = vmatprep.subr.bf16.mxu0 0
    %1831 = vmatpush2.bf16.msra.mxu0 0
    %1832 = vmatprep.subr.bf16.mxu0 0
    %1833 = vmatpush2.bf16.msra.mxu0 0
    %1834 = vmatprep.mubr.bf16.mxu0 0
    %1835 = vmatmul.mubr.bf16.gmra.mxu0 %v1800
    %v1836 = vpop.f32.mrf.mxu0
    %v1837 = vadd.f32 %v1766, %v1836
    %v1838 = vpop.f32.mrf.mxu0
    %v1839 = vpop.f32.mrf.mxu0
    %v1840 = vpop.f32.mrf.mxu0
    %1841 = vdwg.mxu0
    %v1842 = vld [vmem:[%s18] sm:$0xf]
    %v1843 = vld [vmem:[%s18 + $0x4] sm:$0xf]
    %v1844 = vld [vmem:[%s18 + $0x8] sm:$0xf]
    %v1845 = vld [vmem:[%s18 + $0xc] sm:$0xf]
    %v1846 = vld [vmem:[#allocation22] sm:$0x1]
    %v1848 = vlaneseq
    %v1849 = vshrl.u32 %v1848, 7
    %v1850 = vsub.s32 0, %v1849
    %v1851 = vrot.slane %v1846, %v1850
    %v1857 = vunpack.c.l.b16 %v1842
    %v1858 = vunpack.c.l.b16 %v1843
    %v1859 = vunpack.c.l.b16 %v1844
    %v1860 = vunpack.c.l.b16 %v1845
    %v1861 = vpack.c.b16 %v1858, %v1857
    %v1862 = vpack.c.b16 %v1860, %v1859
    %v1866 = vsel %vm428, %v1747, 0
    %1868 = vmatprep.subr.bf16.mxu0 0
    %1869 = vmatpush1.bf16.msra.mxu0 0
    %1870 = vmatprep.subr.bf16.mxu0 0
    %1871 = vmatpush1.bf16.msra.mxu0 0
    %1872 = vmatprep.subr.bf16.mxu0 0
    %1873 = vmatpush1.bf16.msra.mxu0 0
    %1874 = vmatprep.subr.bf16.mxu0 0
    %1875 = vmatpush1.bf16.msra.mxu0 0
    %1876 = vmatprep.subr.bf16.mxu0 0
    %1877 = vmatpush1.bf16.msra.mxu0 0
    %1878 = vmatprep.subr.bf16.mxu0 0
    %1879 = vmatpush1.bf16.msra.mxu0 0
    %1880 = vmatprep.subr.bf16.mxu0 0
    %1881 = vmatpush1.bf16.msra.mxu0 %v1862
    %1882 = vmatprep.subr.bf16.mxu0 0
    %1883 = vmatpush1.bf16.msra.mxu0 %v1861
    %1884 = vmatprep.subr.bf16.mxu0 0
    %1885 = vmatpush2.bf16.msra.mxu0 0
    %1886 = vmatprep.subr.bf16.mxu0 0
    %1887 = vmatpush2.bf16.msra.mxu0 0
    %1888 = vmatprep.subr.bf16.mxu0 0
    %1889 = vmatpush2.bf16.msra.mxu0 0
    %1890 = vmatprep.subr.bf16.mxu0 0
    %1891 = vmatpush2.bf16.msra.mxu0 0
    %1892 = vmatprep.subr.bf16.mxu0 0
    %1893 = vmatpush2.bf16.msra.mxu0 0
    %1894 = vmatprep.subr.bf16.mxu0 0
    %1895 = vmatpush2.bf16.msra.mxu0 0
    %1896 = vmatprep.subr.bf16.mxu0 0
    %1897 = vmatpush2.bf16.msra.mxu0 0
    %1898 = vmatprep.subr.bf16.mxu0 0
    %1899 = vmatpush2.bf16.msra.mxu0 0
    %1900 = vmatprep.mubr.bf16.mxu0 0
    %1901 = vmatmul.mubr.bf16.gmra.mxu0 %v1866
    %v1902 = vpop.f32.mrf.mxu0
    %v1903 = vadd.f32 %v1851, %v1902
    %v1904 = vpop.f32.mrf.mxu0
    %v1905 = vpop.f32.mrf.mxu0
    %v1906 = vpop.f32.mrf.mxu0
    %1907 = vdwg.mxu0
    %v1909 = vcombine.high %v1903, %v1903
    %v1911 = vld [vmem:[#allocation24] sm:$0xf]
    %v1912 = vld [vmem:[#allocation24 + $0x4] sm:$0xf]
    %v1913 = vld [vmem:[#allocation24 + $0x8] sm:$0xf]
    %v1914 = vld [vmem:[#allocation24 + $0xc] sm:$0xf]
    %v1915 = vld [vmem:[#allocation25] sm:$0x1]
    %v1917 = vlaneseq
    %v1918 = vshrl.u32 %v1917, 7
    %v1919 = vsub.s32 0, %v1918
    %v1920 = vrot.slane %v1915, %v1919
    %v1926 = vunpack.c.l.b16 %v1911
    %v1927 = vunpack.c.l.b16 %v1912
    %v1928 = vunpack.c.l.b16 %v1913
    %v1929 = vunpack.c.l.b16 %v1914
    %v1930 = vpack.c.b16 %v1927, %v1926
    %v1931 = vpack.c.b16 %v1929, %v1928
    %1934 = vmatprep.subr.bf16.mxu0 0
    %1935 = vmatpush1.bf16.msra.mxu0 0
    %1936 = vmatprep.subr.bf16.mxu0 0
    %1937 = vmatpush1.bf16.msra.mxu0 0
    %1938 = vmatprep.subr.bf16.mxu0 0
    %1939 = vmatpush1.bf16.msra.mxu0 0
    %1940 = vmatprep.subr.bf16.mxu0 0
    %1941 = vmatpush1.bf16.msra.mxu0 0
    %1942 = vmatprep.subr.bf16.mxu0 0
    %1943 = vmatpush1.bf16.msra.mxu0 0
    %1944 = vmatprep.subr.bf16.mxu0 0
    %1945 = vmatpush1.bf16.msra.mxu0 0
    %1946 = vmatprep.subr.bf16.mxu0 0
    %1947 = vmatpush1.bf16.msra.mxu0 %v1931
    %1948 = vmatprep.subr.bf16.mxu0 0
    %1949 = vmatpush1.bf16.msra.mxu0 %v1930
    %1950 = vmatprep.subr.bf16.mxu0 0
    %1951 = vmatpush2.bf16.msra.mxu0 0
    %1952 = vmatprep.subr.bf16.mxu0 0
    %1953 = vmatpush2.bf16.msra.mxu0 0
    %1954 = vmatprep.subr.bf16.mxu0 0
    %1955 = vmatpush2.bf16.msra.mxu0 0
    %1956 = vmatprep.subr.bf16.mxu0 0
    %1957 = vmatpush2.bf16.msra.mxu0 0
    %1958 = vmatprep.subr.bf16.mxu0 0
    %1959 = vmatpush2.bf16.msra.mxu0 0
    %1960 = vmatprep.subr.bf16.mxu0 0
    %1961 = vmatpush2.bf16.msra.mxu0 0
    %1962 = vmatprep.subr.bf16.mxu0 0
    %1963 = vmatpush2.bf16.msra.mxu0 0
    %1964 = vmatprep.subr.bf16.mxu0 0
    %1965 = vmatpush2.bf16.msra.mxu0 0
    %1966 = vmatprep.mubr.bf16.mxu0 0
    %1967 = vmatmul.mubr.bf16.gmra.mxu0 %v1866
    %v1968 = vpop.f32.mrf.mxu0
    %v1969 = vadd.f32 %v1920, %v1968
    %v1970 = vpop.f32.mrf.mxu0
    %v1971 = vpop.f32.mrf.mxu0
    %v1972 = vpop.f32.mrf.mxu0
    %1973 = vdwg.mxu0
    %v1975 = vcombine.high %v1969, %v1969
    %v1979 = vunpack.c.l.s4 1966171168
    %v1980 = vunpack.c.0.s8 %v1979
    %v1981 = vlaneseq
    %v1982 = vshrl.u32 %v1981, 7
    %v1983 = vsub.s32 %v1980, %v1982
    %v1984 = vrot.slane %v1837, %v1983
    %v1985 = vcombine.high %v1984, %v1984
    %v1987 = vunpack.c.l.s4 1966171168
    %v1988 = vunpack.c.0.s8 %v1987
    %v1989 = vlaneseq
    %v1990 = vshrl.u32 %v1989, 7
    %v1991 = vsub.s32 %v1988, %v1990
    %v1992 = vrot.slane %v1984, %v1991
    %v1994 = vunpack.c.l.s4 1966171168
    %v1995 = vunpack.c.0.s8 %v1994
    %v1996 = vlaneseq
    %v1997 = vshrl.u32 %v1996, 7
    %v1998 = vsub.s32 %v1995, %v1997
    %v1999 = vrot.slane %v1985, %v1998
    %v2000 = vlaneseq
    %v2001 = vshrl.u32 %v2000, 7
    %v2002 = vsub.s32 0, %v2001
    %v2003 = vrot.slane %v1992, %v2002
    %v2004 = vlaneseq
    %v2005 = vshrl.u32 %v2004, 7
    %v2006 = vsub.s32 0, %v2005
    %v2007 = vrot.slane %v1999, %v2006
    %v2010 = vmul.f32 %v2003, %v1903
    %v2011 = vmul.f32 %v2007, %v1909
    %vm2012 = vcmask 257024
    %v2013 = vsel %vm2012, %v2010, 0.0
    %2014 = vadd.xlane.f32.xlu0 %v2013
    %v2015 = vpop.xlane.xlu0 %2014
    %v2016 = vsel %vm2012, %v2011, 0.0
    %2017 = vadd.xlane.f32.xlu0 %v2016
    %v2018 = vpop.xlane.xlu0 %2017
    %v2019 = vmul.f32 %v2015, 0.17677669
    %v2020 = vmul.f32 %v2018, 0.17677669
    %vm2021 = vcmask 1043456
    %v2022 = vsel %vm2021, %v2019, -inf
    %v2023 = vrot.slane %v2022, 4
    %v2024 = vmax.f32 %v2022, %v2023
    %v2025 = vrot.slane %v2024, 2
    %v2026 = vmax.f32 %v2024, %v2025
    %v2027 = vrot.slane %v2026, 1
    %v2028 = vmax.f32 %v2026, %v2027
    %v2029 = vsel %vm2021, %v2020, -inf
    %v2030 = vrot.slane %v2029, 4
    %v2031 = vmax.f32 %v2029, %v2030
    %v2032 = vrot.slane %v2031, 2
    %v2033 = vmax.f32 %v2031, %v2032
    %v2034 = vrot.slane %v2033, 1
    %v2035 = vmax.f32 %v2033, %v2034
    %v2036 = vsub.f32 %v2019, %v2028
    %v2037 = vsub.f32 %v2020, %v2035
    %v2038 = vmul.f32 %v2036, 1.442695
    %v2039 = vpow.pop %v2038
    %v2040 = vmul.f32 %v2037, 1.442695
    %v2041 = vpow.pop %v2040
    %v2042 = vsel %vm2021, %v2039, 0.0
    %v2043 = vrot.slane %v2042, 4
    %v2044 = vadd.f32 %v2042, %v2043
    %v2045 = vrot.slane %v2044, 2
    %v2046 = vadd.f32 %v2044, %v2045
    %v2047 = vrot.slane %v2046, 1
    %v2048 = vadd.f32 %v2046, %v2047
    %v2049 = vsel %vm2021, %v2041, 0.0
    %v2050 = vrot.slane %v2049, 4
    %v2051 = vadd.f32 %v2049, %v2050
    %v2052 = vrot.slane %v2051, 2
    %v2053 = vadd.f32 %v2051, %v2052
    %v2054 = vrot.slane %v2053, 1
    %v2055 = vadd.f32 %v2053, %v2054
    %v2056 = vrcp.pop %v2048
    %v2057 = vrcp.pop %v2055
    %v2058 = vmul.f32 %v2039, %v2056
    %v2059 = vmul.f32 %v2041, %v2057
    %v2060 = vmul.f32 %v2058, %v1969
    %v2061 = vmul.f32 %v2059, %v1975
    %v2062 = vsel %vm2012, %v2060, 0.0
    %v2063 = vrot.slane %v2062, 4
    %v2064 = vadd.f32 %v2062, %v2063
    %v2065 = vrot.slane %v2064, 2
    %v2066 = vadd.f32 %v2064, %v2065
    %v2067 = vrot.slane %v2066, 1
    %v2068 = vadd.f32 %v2066, %v2067
    %v2069 = vsel %vm2012, %v2061, 0.0
    %v2070 = vrot.slane %v2069, 4
    %v2071 = vadd.f32 %v2069, %v2070
    %v2072 = vrot.slane %v2071, 2
    %v2073 = vadd.f32 %v2071, %v2072
    %v2074 = vrot.slane %v2073, 1
    %v2075 = vadd.f32 %v2073, %v2074
    %v2076 = vpack.c.bf16 %v2068, %v2068
    %v2077 = vpack.c.bf16 %v2075, %v2075
    %v2078 = vld [vmem:[#allocation27] sm:$0xff]
    %v2079 = vld [vmem:[#allocation27 + $0x8] sm:$0xf]
    %v2080 = vld [vmem:[#allocation27 + $0xc] sm:$0xff]
    %v2081 = vld [vmem:[#allocation27 + $0x14] sm:$0xf]
    %v2082 = vld [vmem:[#allocation27 + $0x18] sm:$0xff]
    %v2083 = vld [vmem:[#allocation27 + $0x20] sm:$0xf]
    %v2084 = vld [vmem:[#allocation27 + $0x24] sm:$0xff]
    %v2085 = vld [vmem:[#allocation27 + $0x2c] sm:$0xf]
    %v2086 = vld [vmem:[#allocation28] sm:$0x7]
    %v2088 = vlaneseq
    %v2089 = vshrl.u32 %v2088, 7
    %v2090 = vsub.s32 0, %v2089
    %v2091 = vrot.slane %v2086, %v2090
    %v2092 = vlaneseq
    %v2093 = vshrl.u32 %v2092, 7
    %v2094 = vsub.s32 1, %v2093
    %v2095 = vrot.slane %v2086, %v2094
    %v2096 = vlaneseq
    %v2097 = vshrl.u32 %v2096, 7
    %v2098 = vsub.s32 2, %v2097
    %v2099 = vrot.slane %v2086, %v2098
    %v2105 = vunpack.c.l.b16 %v2076
    %v2106 = vunpack.c.l.b16 %v2077
    %v2107 = vsel %vm876, %v2106, %v2105
    %v2108 = vpack.c.b16 %v2107, %v2107
    %v2117 = vunpack.c.l.b16 %v2078
    %v2118 = vunpack.c.h.b16 %v2078
    %v2119 = vunpack.c.l.b16 %v2079
    %v2120 = vunpack.c.l.b16 %v2080
    %v2121 = vunpack.c.h.b16 %v2080
    %v2122 = vunpack.c.l.b16 %v2081
    %v2123 = vunpack.c.l.b16 %v2082
    %v2124 = vunpack.c.h.b16 %v2082
    %v2125 = vunpack.c.l.b16 %v2083
    %v2126 = vunpack.c.l.b16 %v2084
    %v2127 = vunpack.c.h.b16 %v2084
    %v2128 = vunpack.c.l.b16 %v2085
    %v2129 = vpack.c.b16 %v2120, %v2117
    %v2130 = vpack.c.b16 %v2121, %v2118
    %v2131 = vpack.c.b16 %v2122, %v2119
    %v2132 = vpack.c.b16 %v2126, %v2123
    %v2133 = vpack.c.b16 %v2127, %v2124
    %v2134 = vpack.c.b16 %v2128, %v2125
    %v2142 = vsel %vm428, %v2108, 0
    %2144 = vmatprep.subr.bf16.mxu0 0
    %2145 = vmatpush1.bf16.msra.mxu0 0
    %2146 = vmatprep.subr.bf16.mxu0 0
    %2147 = vmatpush1.bf16.msra.mxu0 0
    %2148 = vmatprep.subr.bf16.mxu0 0
    %2149 = vmatpush1.bf16.msra.mxu0 0
    %2150 = vmatprep.subr.bf16.mxu0 0
    %2151 = vmatpush1.bf16.msra.mxu0 0
    %2152 = vmatprep.subr.bf16.mxu0 0
    %2153 = vmatpush1.bf16.msra.mxu0 0
    %2154 = vmatprep.subr.bf16.mxu0 0
    %2155 = vmatpush1.bf16.msra.mxu0 0
    %2156 = vmatprep.subr.bf16.mxu0 %v2133
    %2157 = vmatpush1.bf16.msra.mxu0 %v2132
    %2158 = vmatprep.subr.bf16.mxu0 %v2130
    %2159 = vmatpush1.bf16.msra.mxu0 %v2129
    %2160 = vmatprep.subr.bf16.mxu0 0
    %2161 = vmatpush2.bf16.msra.mxu0 0
    %2162 = vmatprep.subr.bf16.mxu0 0
    %2163 = vmatpush2.bf16.msra.mxu0 0
    %2164 = vmatprep.subr.bf16.mxu0 0
    %2165 = vmatpush2.bf16.msra.mxu0 0
    %2166 = vmatprep.subr.bf16.mxu0 0
    %2167 = vmatpush2.bf16.msra.mxu0 0
    %2168 = vmatprep.subr.bf16.mxu0 0
    %2169 = vmatpush2.bf16.msra.mxu0 0
    %2170 = vmatprep.subr.bf16.mxu0 0
    %2171 = vmatpush2.bf16.msra.mxu0 0
    %2172 = vmatprep.subr.bf16.mxu0 0
    %2173 = vmatpush2.bf16.msra.mxu0 0
    %2174 = vmatprep.subr.bf16.mxu0 0
    %2175 = vmatpush2.bf16.msra.mxu0 0
    %2176 = vmatprep.mubr.bf16.mxu0 0
    %2177 = vmatmul.mubr.bf16.gmra.mxu0 %v2142
    %v2178 = vpop.f32.mrf.mxu0
    %v2179 = vadd.f32 %v2091, %v2178
    %v2180 = vpop.f32.mrf.mxu0
    %v2181 = vadd.f32 %v2095, %v2180
    %v2182 = vpop.f32.mrf.mxu0
    %v2183 = vpop.f32.mrf.mxu0
    %2184 = vdwg.mxu0
    %2185 = vmatprep.subr.bf16.mxu0 0
    %2186 = vmatpush1.bf16.msra.mxu0 0
    %2187 = vmatprep.subr.bf16.mxu0 0
    %2188 = vmatpush1.bf16.msra.mxu0 0
    %2189 = vmatprep.subr.bf16.mxu0 0
    %2190 = vmatpush1.bf16.msra.mxu0 0
    %2191 = vmatprep.subr.bf16.mxu0 0
    %2192 = vmatpush1.bf16.msra.mxu0 0
    %2193 = vmatprep.subr.bf16.mxu0 0
    %2194 = vmatpush1.bf16.msra.mxu0 0
    %2195 = vmatprep.subr.bf16.mxu0 0
    %2196 = vmatpush1.bf16.msra.mxu0 0
    %2197 = vmatprep.subr.bf16.mxu0 0
    %2198 = vmatpush1.bf16.msra.mxu0 %v2134
    %2199 = vmatprep.subr.bf16.mxu0 0
    %2200 = vmatpush1.bf16.msra.mxu0 %v2131
    %2201 = vmatprep.subr.bf16.mxu0 0
    %2202 = vmatpush2.bf16.msra.mxu0 0
    %2203 = vmatprep.subr.bf16.mxu0 0
    %2204 = vmatpush2.bf16.msra.mxu0 0
    %2205 = vmatprep.subr.bf16.mxu0 0
    %2206 = vmatpush2.bf16.msra.mxu0 0
    %2207 = vmatprep.subr.bf16.mxu0 0
    %2208 = vmatpush2.bf16.msra.mxu0 0
    %2209 = vmatprep.subr.bf16.mxu0 0
    %2210 = vmatpush2.bf16.msra.mxu0 0
    %2211 = vmatprep.subr.bf16.mxu0 0
    %2212 = vmatpush2.bf16.msra.mxu0 0
    %2213 = vmatprep.subr.bf16.mxu0 0
    %2214 = vmatpush2.bf16.msra.mxu0 0
    %2215 = vmatprep.subr.bf16.mxu0 0
    %2216 = vmatpush2.bf16.msra.mxu0 0
    %2217 = vmatprep.mubr.bf16.mxu0 0
    %2218 = vmatmul.mubr.bf16.gmra.mxu0 %v2142
    %v2219 = vpop.f32.mrf.mxu0
    %v2220 = vadd.f32 %v2099, %v2219
    %v2221 = vpop.f32.mrf.mxu0
    %v2222 = vpop.f32.mrf.mxu0
    %v2223 = vpop.f32.mrf.mxu0
    %2224 = vdwg.mxu0
    %v2225 = vlaneseq
    %v2226 = vand.u32 %v2225, 127
    %v2227 = vadd.s32 %v2226, 128
    %v2228 = vadd.s32 %v2226, 256
    %vm2229 = vcmp.lt.s32.totalorder %v2226, 366
    %vm2230 = vcmp.lt.s32.totalorder %v2227, 366
    %vm2231 = vcmp.lt.s32.totalorder %v2228, 366
    %v2232 = vsel %vm2229, 1, 0
    %v2233 = vsel %vm2230, 1, 0
    %v2234 = vsel %vm2231, 1, 0
    %v2235 = vcvt.s32.f32 %v2232
    %v2236 = vcvt.s32.f32 %v2233
    %v2237 = vcvt.s32.f32 %v2234
    %v2238 = vmul.f32 %v2179, %v2235
    %v2239 = vmul.f32 %v2181, %v2236
    %v2240 = vmul.f32 %v2220, %v2237
    %vm2241 = vcmask 1041408
    %v2242 = vsel %vm2241, %v2238, 0.0
    %v2243 = vsel %vm2241, %v2239, 0.0
    %v2244 = vadd.f32 %v2242, %v2243
    %v2245 = vsel %vm2241, %v2240, 0.0
    %v2246 = vadd.f32 %v2244, %v2245
    %2247 = vadd.xlane.f32.xlu0 %v2246
    %v2248 = vpop.xlane.xlu0 %2247
    %v2249 = vrcp.pop 366.0
    %v2250 = vmul.f32 %v2248, %v2249
    %v2251 = vsub.f32 %v2179, %v2250
    %v2252 = vsub.f32 %v2181, %v2250
    %v2253 = vsub.f32 %v2220, %v2250
    %v2254 = vmul.f32 %v2251, %v2235
    %v2255 = vmul.f32 %v2252, %v2236
    %v2256 = vmul.f32 %v2253, %v2237
    %v2257 = vmul.f32 %v2254, %v2254
    %v2258 = vmul.f32 %v2255, %v2255
    %v2259 = vmul.f32 %v2256, %v2256
    %v2260 = vsel %vm2241, %v2257, 0.0
    %v2261 = vsel %vm2241, %v2258, 0.0
    %v2262 = vadd.f32 %v2260, %v2261
    %v2263 = vsel %vm2241, %v2259, 0.0
    %v2264 = vadd.f32 %v2262, %v2263
    %2265 = vadd.xlane.f32.xlu0 %v2264
    %v2266 = vpop.xlane.xlu0 %2265
    %v2267 = vmul.f32 %v2266, %v2249
    %v2268 = vadd.f32 %v2267, 1e-05
    %v2269 = vrsqrt.pop %v2268
    %v2270 = vmul.f32 %v2251, %v2269
    %v2271 = vmul.f32 %v2252, %v2269
    %v2272 = vmul.f32 %v2253, %v2269
    %v2273 = vld [vmem:[#allocation30] sm:$0x7]
    %v2275 = vlaneseq
    %v2276 = vshrl.u32 %v2275, 7
    %v2277 = vsub.s32 0, %v2276
    %v2278 = vrot.slane %v2273, %v2277
    %v2279 = vlaneseq
    %v2280 = vshrl.u32 %v2279, 7
    %v2281 = vsub.s32 1, %v2280
    %v2282 = vrot.slane %v2273, %v2281
    %v2283 = vlaneseq
    %v2284 = vshrl.u32 %v2283, 7
    %v2285 = vsub.s32 2, %v2284
    %v2286 = vrot.slane %v2273, %v2285
    %v2290 = vmul.f32 %v2270, %v2278
    %v2291 = vmul.f32 %v2271, %v2282
    %v2292 = vmul.f32 %v2272, %v2286
    %v2293 = vld [vmem:[#allocation31] sm:$0x7]
    %v2295 = vlaneseq
    %v2296 = vshrl.u32 %v2295, 7
    %v2297 = vsub.s32 0, %v2296
    %v2298 = vrot.slane %v2293, %v2297
    %v2299 = vlaneseq
    %v2300 = vshrl.u32 %v2299, 7
    %v2301 = vsub.s32 1, %v2300
    %v2302 = vrot.slane %v2293, %v2301
    %v2303 = vlaneseq
    %v2304 = vshrl.u32 %v2303, 7
    %v2305 = vsub.s32 2, %v2304
    %v2306 = vrot.slane %v2293, %v2305
    %v2310 = vadd.f32 %v2290, %v2298
    %v2311 = vadd.f32 %v2291, %v2302
    %v2312 = vadd.f32 %v2292, %v2306
    %v2313 = vmax.f32 %v2310, 0.0
    %v2314 = vmax.f32 %v2311, 0.0
    %v2315 = vmax.f32 %v2312, 0.0
    %vm2316 = vcmp.eq.s32.totalorder %v2232, 1
    %vm2317 = vcmp.eq.s32.totalorder %v2233, 1
    %vm2318 = vcmp.eq.s32.totalorder %v2234, 1
    %v2319 = vsel %vm2316, %v2313, 0.0
    %v2320 = vsel %vm2317, %v2314, 0.0
    %v2321 = vsel %vm2318, %v2315, 0.0
    %v2325 = vcombine.low %v2319, %v2320
    %v2327 = vunpack.c.l.s4 1983009808
    %v2328 = vunpack.c.0.s8 %v2327
    %v2329 = vlaneseq
    %v2330 = vshrl.u32 %v2329, 7
    %v2331 = vsub.s32 %v2328, %v2330
    %v2332 = vrot.slane %v2325, %v2331
    %v2334 = vunpack.c.l.s4 1983009808
    %v2335 = vunpack.c.0.s8 %v2334
    %v2336 = vlaneseq
    %v2337 = vshrl.u32 %v2336, 7
    %v2338 = vsub.s32 %v2335, %v2337
    %v2339 = vrot.slane %v2321, %v2338
    %v2340 = vcombine.low %v2332, %v2339
    %2342 = vst [vmem:[%s26] sm:$0x3f] %v2340
    // Predicated region
    $region186: #{vectornet_loss.1} parent=1 // pred_check
      _
    $region187: #{vectornet_loss.1} parent=1 // pred_check_branch
      %2344 = sbr.rel (0) target = $region189
    $region188: #{vectornet_loss.1} parent=1 // pred_region
      _
    $region189: #{vectornet_loss.1} parent=1 // pred_fallthru
      _
    // Predicated region
    $region190: #{vectornet_loss.1} parent=1 // pred_check
      _
    $region191: #{vectornet_loss.1} parent=1 // pred_check_branch
      %2346 = sbr.rel (0) target = $region193
    $region192: #{vectornet_loss.1} parent=1 // pred_region
      _
    $region193: #{vectornet_loss.1} parent=1 // pred_fallthru
      _
    %2347 = vsyncpa [#allocation3], 1
    %2348 = vsyncpa [#allocation5], 1
    %2349 = vsyncpa [#allocation8], 1
    %2350 = vsyncpa [#allocation11], 1
    %2351 = vsyncpa [#allocation14], 1
    %2352 = vsyncpa [#allocation17], 1
    %2353 = vsyncpa [#allocation20], 1
    %2354 = vsyncpa [#allocation23], 1
    %2355 = vsyncpa [#allocation26], 1
    %2356 = vsyncpa [#allocation29], 1
    %2357 = vsyncpa [#allocation32], 1

</llo_original>
